<compile_context>
chip_gen: v7x
topology: tpu7x:2x2x1
jax: 0.10.0
libtpu: 0.0.40
codegen_flags: <defaults>
</compile_context>

<pallas_src>
import numpy as np

import jax
import jax.numpy as jnp
from jax.experimental import pallas as pl
from jax.experimental.pallas import tpu as pltpu

CONV_LAYERS = 2
KERNEL_SIZE = 5
NUM_HEADS = 16


def encoder_kernel(x_ref, cw_ref, cb_ref,
                   wq_ref, bq_ref, wk_ref, bk_ref, wv_ref, bv_ref,
                   wo_ref, bo_ref, w1_ref, b1_ref, w2_ref, b2_ref,
                   headmask_ref, gsum_ref, hexp_ref,
                   out_ref):
    f32 = jnp.float32
    bf16 = jnp.bfloat16

    bblk, T, C = x_ref.shape
    R = bblk * T                       # fused (batch*time) rows
    L = cw_ref.shape[0]                # conv layers
    K = cw_ref.shape[1] // C           # conv kernel taps
    pad = (K - 1) // 2
    HT, H = gsum_ref.shape             # heads*time, heads

    x3 = x_ref[...]                                           # (bblk, T, C) f32

    # ---- ConvEncoder: per layer = zero-pad + static sublane slices (taps),
    #      lane concat, ONE (R, K*C) @ (K*C, C) bf16 matmul, bias + ReLU. ----
    zpad = jnp.zeros((bblk, pad, C), f32)
    for l in range(L):
        xp = jnp.concatenate([zpad, x3, zpad], axis=1)        # (bblk, T+2p, C)
        x_unf = jnp.concatenate([xp[:, k:k + T, :] for k in range(K)],
                                axis=-1)                      # (bblk, T, K*C)
        y = jnp.dot(x_unf.reshape(R, K * C).astype(bf16), cw_ref[l],
                    preferred_element_type=f32)               # (R, C)
        y = jnp.maximum(y + cb_ref[l], 0.0)
        x3 = y.reshape(bblk, T, C)

    conv_bf = x3.reshape(R, C).astype(bf16)

    # ---- MultiHeadAttention (H heads), no per-head loop.
    #      1/sqrt(dh) is already folded into wq / bq by the wrapper. ----
    q2 = jnp.dot(conv_bf, wq_ref[...], preferred_element_type=f32) + bq_ref[...]
    k2 = jnp.dot(conv_bf, wk_ref[...], preferred_element_type=f32) + bk_ref[...]
    v2 = jnp.dot(conv_bf, wv_ref[...], preferred_element_type=f32) + bv_ref[...]

    q3 = q2.reshape(bblk, T, C).astype(bf16)
    k3 = k2.reshape(bblk, T, C)
    v3 = v2.reshape(bblk, T, C)

    # Head-block-diagonal expansion via sublane broadcast + mask (no MXU):
    #   k_exp[b, h*T+j, c] = k[b, j, c] * (c // dh == h)
    hm = headmask_ref[...]                                    # (HT, C) f32 0/1
    k_exp = (jnp.broadcast_to(k3[:, None, :, :], (bblk, H, T, C))
             .reshape(bblk, HT, C) * hm).astype(bf16)
    v_exp = (jnp.broadcast_to(v3[:, None, :, :], (bblk, H, T, C))
             .reshape(bblk, HT, C) * hm).astype(bf16)

    # Per-head scores for ALL heads in one batched matmul: s[b, i, h*T+j].
    s = jnp.einsum('btc,bmc->btm', q3, k_exp,
                   preferred_element_type=f32)                # (bblk, T, HT)
    # Shared row max across heads: softmax per head is shift-invariant, so
    # this is exact; it only risks underflow for extreme score spreads.
    # TODO(synk): use a per-head max for numerically safer trained weights.
    s = s - jnp.max(s, axis=-1, keepdims=True)
    e = jnp.exp(s)                                            # f32
    e_bf = e.astype(bf16)                                     # cast once, reuse

    # Per-head denominators via 0/1 group-sum matmul + approx reciprocal (EUP).
    denom = jnp.dot(e_bf.reshape(R, HT), gsum_ref[...],
                    preferred_element_type=f32) + 1e-20       # (R, H)
    rinv = pl.reciprocal(denom, approx=True)                  # (R, H)
    rinv_c = jnp.dot(rinv.astype(bf16), hexp_ref[...],
                     preferred_element_type=f32)              # (R, C)

    # Context for all heads in one batched matmul, then per-channel normalize.
    ctx = jnp.einsum('btm,bmc->btc', e_bf, v_exp,
                     preferred_element_type=f32).reshape(R, C)
    ctx = ctx * rinv_c

    attn = jnp.dot(ctx.astype(bf16), wo_ref[...],
                   preferred_element_type=f32) + bo_ref[...]  # (R, C)

    # ---- PositionFeedforward: Linear -> ReLU -> Linear ----
    hdn = jnp.maximum(
        jnp.dot(attn.astype(bf16), w1_ref[...], preferred_element_type=f32)
        + b1_ref[...], 0.0)
    ff = jnp.dot(hdn.astype(bf16), w2_ref[...],
                 preferred_element_type=f32) + b2_ref[...]    # (R, C)

    # Lane-dense store: (C, R) with the fused-row axis on the 128-lane axis.
    out_ref[0] = jnp.transpose(ff, (1, 0)).astype(out_ref.dtype)


def _choose_batch_block(B, T, target_rows=512):
    """Largest divisor of B with bblk*T <= target_rows (single grid step when
    B*T fits).  Only split into two steps when each half still has >= 256
    fused rows: good for the two v7x TensorCores, negligible cost on the
    single-TC v5e/v6e."""
    best = 1
    for d in range(1, B + 1):
        if B % d == 0 and d * T <= target_rows:
            best = d
    if best == B and B % 2 == 0 and (B // 2) * T >= 256:
        best = B // 2
    return best


def encoder_forward(x_ncw, params):
    B, C, T = x_ncw.shape
    L, K, H = CONV_LAYERS, KERNEL_SIZE, NUM_HEADS
    assert C % H == 0, "hidden_dim must be divisible by the number of heads"
    assert T % 8 == 0, "sequence length must be a multiple of 8 (sublane tile)"
    dh = C // H
    HT = H * T

    bblk = _choose_batch_block(B, T)
    G = B // bblk
    R = bblk * T

    bf16 = jnp.bfloat16
    f32 = jnp.float32

    x_btc = jnp.transpose(x_ncw, (0, 2, 1)).astype(f32)       # (B, T, C)

    # ---- small structural constants (independent of bblk / R) ----
    m_idx = np.arange(HT)
    c_idx = np.arange(C)
    h_idx = np.arange(H)
    headmask = jnp.asarray((m_idx[:, None] // T) == (c_idx[None, :] // dh), f32)
    gsum = jnp.asarray((m_idx[:, None] // T) == h_idx[None, :], bf16)
    hexp = jnp.asarray(h_idx[:, None] == (c_idx[None, :] // dh), bf16)

    # ---- weights: bf16 matmul operands, f32 biases; fold 1/sqrt(dh) into q ----
    scale = 1.0 / float(dh) ** 0.5
    cw = params['conv_w'].reshape(L, K * C, C).astype(bf16)   # stacked taps
    cb = params['conv_b'].astype(f32)
    wq = (params['wq'] * scale).astype(bf16)
    bq = (params['bq'] * scale).astype(f32)
    wk, wv, wo = (params[n].astype(bf16) for n in ('wk', 'wv', 'wo'))
    bk, bv, bo = (params[n].astype(f32) for n in ('bk', 'bv', 'bo'))
    w1, w2 = params['w1'].astype(bf16), params['w2'].astype(bf16)
    b1, b2 = params['b1'].astype(f32), params['b2'].astype(f32)

    inputs = [x_btc, cw, cb, wq, bq, wk, bk, wv, bv, wo, bo,
              w1, b1, w2, b2, headmask, gsum, hexp]

    def const_spec(a):
        return pl.BlockSpec(a.shape, lambda i, n=a.ndim: (0,) * n)

    in_specs = ([pl.BlockSpec((bblk, T, C), lambda i: (i, 0, 0))]
                + [const_spec(a) for a in inputs[1:]])

    out_t = pl.pallas_call(
        encoder_kernel,
        out_shape=jax.ShapeDtypeStruct((G, C, R), f32),
        grid=(G,),
        in_specs=in_specs,
        out_specs=pl.BlockSpec((1, C, R), lambda i: (i, 0, 0)),
        compiler_params=pltpu.CompilerParams(
            dimension_semantics=("parallel",)),
    )(*inputs)

    # Un-transpose the lane-dense kernel output back to (B, T, C).
    return jnp.transpose(out_t, (0, 2, 1)).reshape(B, T, C)


def encoder_ref(x_ncw, params):
    """Pure-JAX f32 reference with the module's semantics."""
    x = jnp.transpose(x_ncw, (0, 2, 1)).astype(jnp.float32)   # (B, T, C)
    B, T, C = x.shape
    pad = KERNEL_SIZE // 2
    for l in range(CONV_LAYERS):
        xp = jnp.pad(x, ((0, 0), (pad, pad), (0, 0)))
        acc = jnp.zeros_like(x)
        for k in range(KERNEL_SIZE):
            acc += jnp.einsum('btc,cd->btd', xp[:, k:k + T, :],
                              params['conv_w'][l, k])
        x = jax.nn.relu(acc + params['conv_b'][l])
    q = x @ params['wq'] + params['bq']
    k = x @ params['wk'] + params['bk']
    v = x @ params['wv'] + params['bv']
    dh = C // NUM_HEADS
    q4 = q.reshape(B, T, NUM_HEADS, dh)
    k4 = k.reshape(B, T, NUM_HEADS, dh)
    v4 = v.reshape(B, T, NUM_HEADS, dh)
    s = jnp.einsum('bqhd,bkhd->bhqk', q4, k4) / jnp.sqrt(jnp.float32(dh))
    p = jax.nn.softmax(s, axis=-1)
    o = jnp.einsum('bhqk,bkhd->bqhd', p, v4).reshape(B, T, C)
    attn = o @ params['wo'] + params['bo']
    hdn = jax.nn.relu(attn @ params['w1'] + params['b1'])
    return hdn @ params['w2'] + params['b2']


def init_params(key, hidden_dim, ff_dim, conv_layers):
    ks = jax.random.split(key, 14)
    s = 0.1
    return {
        'conv_w': s * jax.random.normal(
            ks[0], (conv_layers, KERNEL_SIZE, hidden_dim, hidden_dim), jnp.float32),
        'conv_b': s * jax.random.normal(ks[1], (conv_layers, 1, hidden_dim), jnp.float32),
        'wq': s * jax.random.normal(ks[2], (hidden_dim, hidden_dim), jnp.float32),
        'bq': s * jax.random.normal(ks[3], (1, hidden_dim), jnp.float32),
        'wk': s * jax.random.normal(ks[4], (hidden_dim, hidden_dim), jnp.float32),
        'bk': s * jax.random.normal(ks[5], (1, hidden_dim), jnp.float32),
        'wv': s * jax.random.normal(ks[6], (hidden_dim, hidden_dim), jnp.float32),
        'bv': s * jax.random.normal(ks[7], (1, hidden_dim), jnp.float32),
        'wo': s * jax.random.normal(ks[8], (hidden_dim, hidden_dim), jnp.float32),
        'bo': s * jax.random.normal(ks[9], (1, hidden_dim), jnp.float32),
        'w1': s * jax.random.normal(ks[10], (hidden_dim, ff_dim), jnp.float32),
        'b1': s * jax.random.normal(ks[11], (1, ff_dim), jnp.float32),
        'w2': s * jax.random.normal(ks[12], (ff_dim, hidden_dim), jnp.float32),
        'b2': s * jax.random.normal(ks[13], (1, hidden_dim), jnp.float32),
    }


if __name__ == "__main__":
    B, T, hidden_dim, ff_dim = 2, 16, 32, 64   # hidden_dim % 16 heads == 0
    key = jax.random.PRNGKey(0)
    kx, kp = jax.random.split(key)
    x = jax.random.normal(kx, (B, hidden_dim, T), jnp.float32)  # Conv1d NCW input
    params = init_params(kp, hidden_dim, ff_dim, CONV_LAYERS)

    out = jax.block_until_ready(encoder_forward(x, params))
    ref = encoder_ref(x, params)

    assert out.shape == (B, T, hidden_dim), out.shape
    # bf16 matmul operands (f32 accumulation) vs. the f32 reference -> ~1e-2.
    assert jnp.allclose(out, ref, atol=5e-2, rtol=5e-2), \
        float(jnp.max(jnp.abs(out - ref)))
    print("KERNEL_OK")
</pallas_src>

<mosaic_0001>
module attributes {stable_mosaic.version = 11 : i64} {
  func.func @encoder_kernel(%arg0: i32, %arg1: memref<2x16x32xf32, #tpu.memory_space<vmem>>, %arg2: memref<2x160x32xbf16, #tpu.memory_space<vmem>>, %arg3: memref<2x1x32xf32, #tpu.memory_space<vmem>>, %arg4: memref<32x32xbf16, #tpu.memory_space<vmem>>, %arg5: memref<1x32xf32, #tpu.memory_space<vmem>>, %arg6: memref<32x32xbf16, #tpu.memory_space<vmem>>, %arg7: memref<1x32xf32, #tpu.memory_space<vmem>>, %arg8: memref<32x32xbf16, #tpu.memory_space<vmem>>, %arg9: memref<1x32xf32, #tpu.memory_space<vmem>>, %arg10: memref<32x32xbf16, #tpu.memory_space<vmem>>, %arg11: memref<1x32xf32, #tpu.memory_space<vmem>>, %arg12: memref<32x64xbf16, #tpu.memory_space<vmem>>, %arg13: memref<1x64xf32, #tpu.memory_space<vmem>>, %arg14: memref<64x32xbf16, #tpu.memory_space<vmem>>, %arg15: memref<1x32xf32, #tpu.memory_space<vmem>>, %arg16: memref<256x32xf32, #tpu.memory_space<vmem>>, %arg17: memref<256x16xbf16, #tpu.memory_space<vmem>>, %arg18: memref<16x32xbf16, #tpu.memory_space<vmem>>, %arg19: memref<1x32x32xf32, #tpu.memory_space<vmem>>) attributes {dimension_semantics = [#tpu.dimension_semantics<parallel>], iteration_bounds = array<i64: 1>, scalar_prefetch = 0 : i64, scratch_operands = 0 : i64, tpu.core_type = #tpu.core_type<tc>, window_params = [{transform_indices = @transform_0, window_bounds = array<i64: 2, 16, 32>}, {pipeline_mode = #tpu.pipeline_mode<synchronous>, transform_indices = @transform_1, window_bounds = array<i64: 2, 160, 32>}, {pipeline_mode = #tpu.pipeline_mode<synchronous>, transform_indices = @transform_2, window_bounds = array<i64: 2, 1, 32>}, {pipeline_mode = #tpu.pipeline_mode<synchronous>, transform_indices = @transform_3, window_bounds = array<i64: 32, 32>}, {pipeline_mode = #tpu.pipeline_mode<synchronous>, transform_indices = @transform_4, window_bounds = array<i64: 1, 32>}, {pipeline_mode = #tpu.pipeline_mode<synchronous>, transform_indices = @transform_5, window_bounds = array<i64: 32, 32>}, {pipeline_mode = #tpu.pipeline_mode<synchronous>, transform_indices = @transform_6, window_bounds = array<i64: 1, 32>}, {pipeline_mode = #tpu.pipeline_mode<synchronous>, transform_indices = @transform_7, window_bounds = array<i64: 32, 32>}, {pipeline_mode = #tpu.pipeline_mode<synchronous>, transform_indices = @transform_8, window_bounds = array<i64: 1, 32>}, {pipeline_mode = #tpu.pipeline_mode<synchronous>, transform_indices = @transform_9, window_bounds = array<i64: 32, 32>}, {pipeline_mode = #tpu.pipeline_mode<synchronous>, transform_indices = @transform_10, window_bounds = array<i64: 1, 32>}, {pipeline_mode = #tpu.pipeline_mode<synchronous>, transform_indices = @transform_11, window_bounds = array<i64: 32, 64>}, {pipeline_mode = #tpu.pipeline_mode<synchronous>, transform_indices = @transform_12, window_bounds = array<i64: 1, 64>}, {pipeline_mode = #tpu.pipeline_mode<synchronous>, transform_indices = @transform_13, window_bounds = array<i64: 64, 32>}, {pipeline_mode = #tpu.pipeline_mode<synchronous>, transform_indices = @transform_14, window_bounds = array<i64: 1, 32>}, {pipeline_mode = #tpu.pipeline_mode<synchronous>, transform_indices = @transform_15, window_bounds = array<i64: 256, 32>}, {pipeline_mode = #tpu.pipeline_mode<synchronous>, transform_indices = @transform_16, window_bounds = array<i64: 256, 16>}, {pipeline_mode = #tpu.pipeline_mode<synchronous>, transform_indices = @transform_17, window_bounds = array<i64: 16, 32>}, {transform_indices = @transform_18, window_bounds = array<i64: 1, 32, 32>}]} {
    %c0 = arith.constant 0 : index
    %c0_0 = arith.constant 0 : index
    %c0_1 = arith.constant 0 : index
    %0 = vector.load %arg1[%c0, %c0_0, %c0_1] : memref<2x16x32xf32, #tpu.memory_space<vmem>>, vector<2x16x32xf32>
    %cst = arith.constant 0.000000e+00 : f32
    %1 = vector.broadcast %cst : f32 to vector<2x2x32xf32>
    %2 = tpu.concatenate %1, %0, %1 in 1 : vector<2x2x32xf32>, vector<2x16x32xf32>, vector<2x2x32xf32> -> vector<2x20x32xf32>
    %3 = vector.extract_strided_slice %2 {offsets = [0, 0, 0], sizes = [2, 16, 32], strides = [1, 1, 1]} : vector<2x20x32xf32> to vector<2x16x32xf32>
    %4 = vector.extract_strided_slice %2 {offsets = [0, 1, 0], sizes = [2, 16, 32], strides = [1, 1, 1]} : vector<2x20x32xf32> to vector<2x16x32xf32>
    %5 = vector.extract_strided_slice %2 {offsets = [0, 2, 0], sizes = [2, 16, 32], strides = [1, 1, 1]} : vector<2x20x32xf32> to vector<2x16x32xf32>
    %6 = vector.extract_strided_slice %2 {offsets = [0, 3, 0], sizes = [2, 16, 32], strides = [1, 1, 1]} : vector<2x20x32xf32> to vector<2x16x32xf32>
    %7 = vector.extract_strided_slice %2 {offsets = [0, 4, 0], sizes = [2, 16, 32], strides = [1, 1, 1]} : vector<2x20x32xf32> to vector<2x16x32xf32>
    %8 = tpu.concatenate %3, %4, %5, %6, %7 in 2 : vector<2x16x32xf32>, vector<2x16x32xf32>, vector<2x16x32xf32>, vector<2x16x32xf32>, vector<2x16x32xf32> -> vector<2x16x160xf32>
    %9 = vector.shape_cast %8 : vector<2x16x160xf32> to vector<32x160xf32>
    %10 = arith.truncf %9 : vector<32x160xf32> to vector<32x160xbf16>
    %c0_2 = arith.constant 0 : index
    %c0_3 = arith.constant 0 : index
    %c0_4 = arith.constant 0 : index
    %11 = vector.load %arg2[%c0_2, %c0_3, %c0_4] : memref<2x160x32xbf16, #tpu.memory_space<vmem>>, vector<1x160x32xbf16>
    %12 = vector.shape_cast %11 : vector<1x160x32xbf16> to vector<160x32xbf16>
    %cst_5 = arith.constant dense<0.000000e+00> : vector<32x32xf32>
    %13 = tpu.matmul %10, %12, %cst_5 {dimension_numbers = #tpu.dot_dimension_numbers<[1], [0], [0], [1], [0, 0, 1, 1], [], []>} : vector<32x160xbf16>, vector<160x32xbf16>, vector<32x32xf32> -> vector<32x32xf32>
    %c0_6 = arith.constant 0 : index
    %c0_7 = arith.constant 0 : index
    %c0_8 = arith.constant 0 : index
    %14 = vector.load %arg3[%c0_6, %c0_7, %c0_8] : memref<2x1x32xf32, #tpu.memory_space<vmem>>, vector<1x1x32xf32>
    %15 = vector.shape_cast %14 : vector<1x1x32xf32> to vector<1x32xf32>
    %16 = vector.broadcast %15 : vector<1x32xf32> to vector<32x32xf32>
    %17 = arith.addf %13, %16 : vector<32x32xf32>
    %cst_9 = arith.constant 0.000000e+00 : f32
    %18 = vector.broadcast %cst_9 : f32 to vector<32x32xf32>
    %19 = arith.maximumf %17, %18 : vector<32x32xf32>
    %20 = vector.shape_cast %19 : vector<32x32xf32> to vector<2x16x32xf32>
    %21 = tpu.concatenate %1, %20, %1 in 1 : vector<2x2x32xf32>, vector<2x16x32xf32>, vector<2x2x32xf32> -> vector<2x20x32xf32>
    %22 = vector.extract_strided_slice %21 {offsets = [0, 0, 0], sizes = [2, 16, 32], strides = [1, 1, 1]} : vector<2x20x32xf32> to vector<2x16x32xf32>
    %23 = vector.extract_strided_slice %21 {offsets = [0, 1, 0], sizes = [2, 16, 32], strides = [1, 1, 1]} : vector<2x20x32xf32> to vector<2x16x32xf32>
    %24 = vector.extract_strided_slice %21 {offsets = [0, 2, 0], sizes = [2, 16, 32], strides = [1, 1, 1]} : vector<2x20x32xf32> to vector<2x16x32xf32>
    %25 = vector.extract_strided_slice %21 {offsets = [0, 3, 0], sizes = [2, 16, 32], strides = [1, 1, 1]} : vector<2x20x32xf32> to vector<2x16x32xf32>
    %26 = vector.extract_strided_slice %21 {offsets = [0, 4, 0], sizes = [2, 16, 32], strides = [1, 1, 1]} : vector<2x20x32xf32> to vector<2x16x32xf32>
    %27 = tpu.concatenate %22, %23, %24, %25, %26 in 2 : vector<2x16x32xf32>, vector<2x16x32xf32>, vector<2x16x32xf32>, vector<2x16x32xf32>, vector<2x16x32xf32> -> vector<2x16x160xf32>
    %28 = vector.shape_cast %27 : vector<2x16x160xf32> to vector<32x160xf32>
    %29 = arith.truncf %28 : vector<32x160xf32> to vector<32x160xbf16>
    %c1 = arith.constant 1 : index
    %c0_10 = arith.constant 0 : index
    %c0_11 = arith.constant 0 : index
    %30 = vector.load %arg2[%c1, %c0_10, %c0_11] : memref<2x160x32xbf16, #tpu.memory_space<vmem>>, vector<1x160x32xbf16>
    %31 = vector.shape_cast %30 : vector<1x160x32xbf16> to vector<160x32xbf16>
    %cst_12 = arith.constant dense<0.000000e+00> : vector<32x32xf32>
    %32 = tpu.matmul %29, %31, %cst_12 {dimension_numbers = #tpu.dot_dimension_numbers<[1], [0], [0], [1], [0, 0, 1, 1], [], []>} : vector<32x160xbf16>, vector<160x32xbf16>, vector<32x32xf32> -> vector<32x32xf32>
    %c1_13 = arith.constant 1 : index
    %c0_14 = arith.constant 0 : index
    %c0_15 = arith.constant 0 : index
    %33 = vector.load %arg3[%c1_13, %c0_14, %c0_15] : memref<2x1x32xf32, #tpu.memory_space<vmem>>, vector<1x1x32xf32>
    %34 = vector.shape_cast %33 : vector<1x1x32xf32> to vector<1x32xf32>
    %35 = vector.broadcast %34 : vector<1x32xf32> to vector<32x32xf32>
    %36 = arith.addf %32, %35 : vector<32x32xf32>
    %cst_16 = arith.constant 0.000000e+00 : f32
    %37 = vector.broadcast %cst_16 : f32 to vector<32x32xf32>
    %38 = arith.maximumf %36, %37 : vector<32x32xf32>
    %39 = vector.shape_cast %38 : vector<32x32xf32> to vector<2x16x32xf32>
    %40 = vector.shape_cast %39 : vector<2x16x32xf32> to vector<32x32xf32>
    %41 = arith.truncf %40 : vector<32x32xf32> to vector<32x32xbf16>
    %c0_17 = arith.constant 0 : index
    %c0_18 = arith.constant 0 : index
    %42 = vector.load %arg4[%c0_17, %c0_18] : memref<32x32xbf16, #tpu.memory_space<vmem>>, vector<32x32xbf16>
    %cst_19 = arith.constant dense<0.000000e+00> : vector<32x32xf32>
    %43 = tpu.matmul %41, %42, %cst_19 {dimension_numbers = #tpu.dot_dimension_numbers<[1], [0], [0], [1], [0, 0, 1, 1], [], []>} : vector<32x32xbf16>, vector<32x32xbf16>, vector<32x32xf32> -> vector<32x32xf32>
    %c0_20 = arith.constant 0 : index
    %c0_21 = arith.constant 0 : index
    %44 = vector.load %arg5[%c0_20, %c0_21] : memref<1x32xf32, #tpu.memory_space<vmem>>, vector<1x32xf32>
    %45 = vector.broadcast %44 : vector<1x32xf32> to vector<32x32xf32>
    %46 = arith.addf %43, %45 : vector<32x32xf32>
    %c0_22 = arith.constant 0 : index
    %c0_23 = arith.constant 0 : index
    %47 = vector.load %arg6[%c0_22, %c0_23] : memref<32x32xbf16, #tpu.memory_space<vmem>>, vector<32x32xbf16>
    %cst_24 = arith.constant dense<0.000000e+00> : vector<32x32xf32>
    %48 = tpu.matmul %41, %47, %cst_24 {dimension_numbers = #tpu.dot_dimension_numbers<[1], [0], [0], [1], [0, 0, 1, 1], [], []>} : vector<32x32xbf16>, vector<32x32xbf16>, vector<32x32xf32> -> vector<32x32xf32>
    %c0_25 = arith.constant 0 : index
    %c0_26 = arith.constant 0 : index
    %49 = vector.load %arg7[%c0_25, %c0_26] : memref<1x32xf32, #tpu.memory_space<vmem>>, vector<1x32xf32>
    %50 = vector.broadcast %49 : vector<1x32xf32> to vector<32x32xf32>
    %51 = arith.addf %48, %50 : vector<32x32xf32>
    %c0_27 = arith.constant 0 : index
    %c0_28 = arith.constant 0 : index
    %52 = vector.load %arg8[%c0_27, %c0_28] : memref<32x32xbf16, #tpu.memory_space<vmem>>, vector<32x32xbf16>
    %cst_29 = arith.constant dense<0.000000e+00> : vector<32x32xf32>
    %53 = tpu.matmul %41, %52, %cst_29 {dimension_numbers = #tpu.dot_dimension_numbers<[1], [0], [0], [1], [0, 0, 1, 1], [], []>} : vector<32x32xbf16>, vector<32x32xbf16>, vector<32x32xf32> -> vector<32x32xf32>
    %c0_30 = arith.constant 0 : index
    %c0_31 = arith.constant 0 : index
    %54 = vector.load %arg9[%c0_30, %c0_31] : memref<1x32xf32, #tpu.memory_space<vmem>>, vector<1x32xf32>
    %55 = vector.broadcast %54 : vector<1x32xf32> to vector<32x32xf32>
    %56 = arith.addf %53, %55 : vector<32x32xf32>
    %57 = vector.shape_cast %46 : vector<32x32xf32> to vector<2x16x32xf32>
    %58 = arith.truncf %57 : vector<2x16x32xf32> to vector<2x16x32xbf16>
    %59 = vector.shape_cast %51 : vector<32x32xf32> to vector<2x16x32xf32>
    %60 = vector.shape_cast %56 : vector<32x32xf32> to vector<2x16x32xf32>
    %c0_32 = arith.constant 0 : index
    %c0_33 = arith.constant 0 : index
    %61 = vector.load %arg16[%c0_32, %c0_33] : memref<256x32xf32, #tpu.memory_space<vmem>>, vector<256x32xf32>
    %62 = vector.shape_cast %59 : vector<2x16x32xf32> to vector<2x1x16x32xf32>
    %63 = vector.shape_cast %62 : vector<2x1x16x32xf32> to vector<2x1x16x32xf32>
    %64 = vector.broadcast %63 : vector<2x1x16x32xf32> to vector<2x16x16x32xf32>
    %65 = vector.shape_cast %64 : vector<2x16x16x32xf32> to vector<2x256x32xf32>
    %66 = vector.shape_cast %61 : vector<256x32xf32> to vector<1x256x32xf32>
    %67 = vector.broadcast %66 : vector<1x256x32xf32> to vector<2x256x32xf32>
    %68 = arith.mulf %65, %67 : vector<2x256x32xf32>
    %69 = arith.truncf %68 : vector<2x256x32xf32> to vector<2x256x32xbf16>
    %70 = vector.shape_cast %60 : vector<2x16x32xf32> to vector<2x1x16x32xf32>
    %71 = vector.shape_cast %70 : vector<2x1x16x32xf32> to vector<2x1x16x32xf32>
    %72 = vector.broadcast %71 : vector<2x1x16x32xf32> to vector<2x16x16x32xf32>
    %73 = vector.shape_cast %72 : vector<2x16x16x32xf32> to vector<2x256x32xf32>
    %74 = vector.shape_cast %61 : vector<256x32xf32> to vector<1x256x32xf32>
    %75 = vector.broadcast %74 : vector<1x256x32xf32> to vector<2x256x32xf32>
    %76 = arith.mulf %73, %75 : vector<2x256x32xf32>
    %77 = arith.truncf %76 : vector<2x256x32xf32> to vector<2x256x32xbf16>
    "tpu.trace_start"() <{level = 10 : i32, message = "btc,bmc->btm"}> : () -> ()
    %cst_34 = arith.constant dense<0.000000e+00> : vector<2x16x256xf32>
    %78 = tpu.matmul %58, %69, %cst_34 {dimension_numbers = #tpu.dot_dimension_numbers<[2], [2], [1], [1], [0, 0, 0, 1, 1, 1], [0], [0]>} : vector<2x16x32xbf16>, vector<2x256x32xbf16>, vector<2x16x256xf32> -> vector<2x16x256xf32>
    "tpu.trace_stop"() : () -> ()
    %cst_35 = arith.constant dense<0xFF800000> : vector<2x16xf32>
    %79 = vector.multi_reduction <maximumf>, %78, %cst_35 [2] : vector<2x16x256xf32> to vector<2x16xf32>
    %80 = vector.shape_cast %79 : vector<2x16xf32> to vector<2x16x1xf32>
    %81 = vector.broadcast %80 : vector<2x16x1xf32> to vector<2x16x256xf32>
    %82 = arith.subf %78, %81 : vector<2x16x256xf32>
    %83 = math.exp %82 : vector<2x16x256xf32>
    %84 = arith.truncf %83 : vector<2x16x256xf32> to vector<2x16x256xbf16>
    %85 = vector.shape_cast %84 : vector<2x16x256xbf16> to vector<32x256xbf16>
    %c0_36 = arith.constant 0 : index
    %c0_37 = arith.constant 0 : index
    %86 = vector.load %arg17[%c0_36, %c0_37] : memref<256x16xbf16, #tpu.memory_space<vmem>>, vector<256x16xbf16>
    %cst_38 = arith.constant dense<0.000000e+00> : vector<32x16xf32>
    %87 = tpu.matmul %85, %86, %cst_38 {dimension_numbers = #tpu.dot_dimension_numbers<[1], [0], [0], [1], [0, 0, 1, 1], [], []>} : vector<32x256xbf16>, vector<256x16xbf16>, vector<32x16xf32> -> vector<32x16xf32>
    %cst_39 = arith.constant 9.99999968E-21 : f32
    %88 = vector.broadcast %cst_39 : f32 to vector<32x16xf32>
    %89 = arith.addf %87, %88 : vector<32x16xf32>
    %90 = tpu.reciprocal %89 {approx = true} : vector<32x16xf32> -> vector<32x16xf32>
    %91 = arith.truncf %90 : vector<32x16xf32> to vector<32x16xbf16>
    %c0_40 = arith.constant 0 : index
    %c0_41 = arith.constant 0 : index
    %92 = vector.load %arg18[%c0_40, %c0_41] : memref<16x32xbf16, #tpu.memory_space<vmem>>, vector<16x32xbf16>
    %cst_42 = arith.constant dense<0.000000e+00> : vector<32x32xf32>
    %93 = tpu.matmul %91, %92, %cst_42 {dimension_numbers = #tpu.dot_dimension_numbers<[1], [0], [0], [1], [0, 0, 1, 1], [], []>} : vector<32x16xbf16>, vector<16x32xbf16>, vector<32x32xf32> -> vector<32x32xf32>
    "tpu.trace_start"() <{level = 10 : i32, message = "btm,bmc->btc"}> : () -> ()
    %cst_43 = arith.constant dense<0.000000e+00> : vector<2x16x32xf32>
    %94 = tpu.matmul %84, %77, %cst_43 {dimension_numbers = #tpu.dot_dimension_numbers<[2], [1], [1], [2], [0, 0, 0, 1, 1, 2], [0], [0]>} : vector<2x16x256xbf16>, vector<2x256x32xbf16>, vector<2x16x32xf32> -> vector<2x16x32xf32>
    "tpu.trace_stop"() : () -> ()
    %95 = vector.shape_cast %94 : vector<2x16x32xf32> to vector<32x32xf32>
    %96 = arith.mulf %95, %93 : vector<32x32xf32>
    %97 = arith.truncf %96 : vector<32x32xf32> to vector<32x32xbf16>
    %c0_44 = arith.constant 0 : index
    %c0_45 = arith.constant 0 : index
    %98 = vector.load %arg10[%c0_44, %c0_45] : memref<32x32xbf16, #tpu.memory_space<vmem>>, vector<32x32xbf16>
    %cst_46 = arith.constant dense<0.000000e+00> : vector<32x32xf32>
    %99 = tpu.matmul %97, %98, %cst_46 {dimension_numbers = #tpu.dot_dimension_numbers<[1], [0], [0], [1], [0, 0, 1, 1], [], []>} : vector<32x32xbf16>, vector<32x32xbf16>, vector<32x32xf32> -> vector<32x32xf32>
    %c0_47 = arith.constant 0 : index
    %c0_48 = arith.constant 0 : index
    %100 = vector.load %arg11[%c0_47, %c0_48] : memref<1x32xf32, #tpu.memory_space<vmem>>, vector<1x32xf32>
    %101 = vector.broadcast %100 : vector<1x32xf32> to vector<32x32xf32>
    %102 = arith.addf %99, %101 : vector<32x32xf32>
    %103 = arith.truncf %102 : vector<32x32xf32> to vector<32x32xbf16>
    %c0_49 = arith.constant 0 : index
    %c0_50 = arith.constant 0 : index
    %104 = vector.load %arg12[%c0_49, %c0_50] : memref<32x64xbf16, #tpu.memory_space<vmem>>, vector<32x64xbf16>
    %cst_51 = arith.constant dense<0.000000e+00> : vector<32x64xf32>
    %105 = tpu.matmul %103, %104, %cst_51 {dimension_numbers = #tpu.dot_dimension_numbers<[1], [0], [0], [1], [0, 0, 1, 1], [], []>} : vector<32x32xbf16>, vector<32x64xbf16>, vector<32x64xf32> -> vector<32x64xf32>
    %c0_52 = arith.constant 0 : index
    %c0_53 = arith.constant 0 : index
    %106 = vector.load %arg13[%c0_52, %c0_53] : memref<1x64xf32, #tpu.memory_space<vmem>>, vector<1x64xf32>
    %107 = vector.broadcast %106 : vector<1x64xf32> to vector<32x64xf32>
    %108 = arith.addf %105, %107 : vector<32x64xf32>
    %cst_54 = arith.constant 0.000000e+00 : f32
    %109 = vector.broadcast %cst_54 : f32 to vector<32x64xf32>
    %110 = arith.maximumf %108, %109 : vector<32x64xf32>
    %111 = arith.truncf %110 : vector<32x64xf32> to vector<32x64xbf16>
    %c0_55 = arith.constant 0 : index
    %c0_56 = arith.constant 0 : index
    %112 = vector.load %arg14[%c0_55, %c0_56] : memref<64x32xbf16, #tpu.memory_space<vmem>>, vector<64x32xbf16>
    %cst_57 = arith.constant dense<0.000000e+00> : vector<32x32xf32>
    %113 = tpu.matmul %111, %112, %cst_57 {dimension_numbers = #tpu.dot_dimension_numbers<[1], [0], [0], [1], [0, 0, 1, 1], [], []>} : vector<32x64xbf16>, vector<64x32xbf16>, vector<32x32xf32> -> vector<32x32xf32>
    %c0_58 = arith.constant 0 : index
    %c0_59 = arith.constant 0 : index
    %114 = vector.load %arg15[%c0_58, %c0_59] : memref<1x32xf32, #tpu.memory_space<vmem>>, vector<1x32xf32>
    %115 = vector.broadcast %114 : vector<1x32xf32> to vector<32x32xf32>
    %116 = arith.addf %113, %115 : vector<32x32xf32>
    %117 = tpu.transpose %116, [1, 0] : vector<32x32xf32> -> vector<32x32xf32>
    %c0_60 = arith.constant 0 : index
    %c0_61 = arith.constant 0 : index
    %c0_62 = arith.constant 0 : index
    %118 = vector.load %arg19[%c0_60, %c0_61, %c0_62] : memref<1x32x32xf32, #tpu.memory_space<vmem>>, vector<1x32x32xf32>
    %119 = vector.shape_cast %118 : vector<1x32x32xf32> to vector<32x32xf32>
    %120 = vector.shape_cast %117 : vector<32x32xf32> to vector<1x32x32xf32>
    tpu.vector_store %arg19[%c0_60, %c0_61, %c0_62], %120 {strides = array<i32>} : memref<1x32x32xf32, #tpu.memory_space<vmem>>, vector<1x32x32xf32>,
    return
  }
  func.func @transform_0(%arg0: i32) -> (i32, i32, i32) {
    %c0_i32 = arith.constant 0 : i32
    %c0_i32_0 = arith.constant 0 : i32
    %c0_i32_1 = arith.constant 0 : i32
    return %arg0, %c0_i32, %c0_i32_0 : i32, i32, i32
  }
  func.func @transform_1(%arg0: i32) -> (i32, i32, i32) {
    %c0_i32 = arith.constant 0 : i32
    %c0_i32_0 = arith.constant 0 : i32
    %c0_i32_1 = arith.constant 0 : i32
    %c0_i32_2 = arith.constant 0 : i32
    return %c0_i32, %c0_i32_0, %c0_i32_1 : i32, i32, i32
  }
  func.func @transform_2(%arg0: i32) -> (i32, i32, i32) {
    %c0_i32 = arith.constant 0 : i32
    %c0_i32_0 = arith.constant 0 : i32
    %c0_i32_1 = arith.constant 0 : i32
    %c0_i32_2 = arith.constant 0 : i32
    return %c0_i32, %c0_i32_0, %c0_i32_1 : i32, i32, i32
  }
  func.func @transform_3(%arg0: i32) -> (i32, i32) {
    %c0_i32 = arith.constant 0 : i32
    %c0_i32_0 = arith.constant 0 : i32
    %c0_i32_1 = arith.constant 0 : i32
    return %c0_i32, %c0_i32_0 : i32, i32
  }
  func.func @transform_4(%arg0: i32) -> (i32, i32) {
    %c0_i32 = arith.constant 0 : i32
    %c0_i32_0 = arith.constant 0 : i32
    %c0_i32_1 = arith.constant 0 : i32
    return %c0_i32, %c0_i32_0 : i32, i32
  }
  func.func @transform_5(%arg0: i32) -> (i32, i32) {
    %c0_i32 = arith.constant 0 : i32
    %c0_i32_0 = arith.constant 0 : i32
    %c0_i32_1 = arith.constant 0 : i32
    return %c0_i32, %c0_i32_0 : i32, i32
  }
  func.func @transform_6(%arg0: i32) -> (i32, i32) {
    %c0_i32 = arith.constant 0 : i32
    %c0_i32_0 = arith.constant 0 : i32
    %c0_i32_1 = arith.constant 0 : i32
    return %c0_i32, %c0_i32_0 : i32, i32
  }
  func.func @transform_7(%arg0: i32) -> (i32, i32) {
    %c0_i32 = arith.constant 0 : i32
    %c0_i32_0 = arith.constant 0 : i32
    %c0_i32_1 = arith.constant 0 : i32
    return %c0_i32, %c0_i32_0 : i32, i32
  }
  func.func @transform_8(%arg0: i32) -> (i32, i32) {
    %c0_i32 = arith.constant 0 : i32
    %c0_i32_0 = arith.constant 0 : i32
    %c0_i32_1 = arith.constant 0 : i32
    return %c0_i32, %c0_i32_0 : i32, i32
  }
  func.func @transform_9(%arg0: i32) -> (i32, i32) {
    %c0_i32 = arith.constant 0 : i32
    %c0_i32_0 = arith.constant 0 : i32
    %c0_i32_1 = arith.constant 0 : i32
    return %c0_i32, %c0_i32_0 : i32, i32
  }
  func.func @transform_10(%arg0: i32) -> (i32, i32) {
    %c0_i32 = arith.constant 0 : i32
    %c0_i32_0 = arith.constant 0 : i32
    %c0_i32_1 = arith.constant 0 : i32
    return %c0_i32, %c0_i32_0 : i32, i32
  }
  func.func @transform_11(%arg0: i32) -> (i32, i32) {
    %c0_i32 = arith.constant 0 : i32
    %c0_i32_0 = arith.constant 0 : i32
    %c0_i32_1 = arith.constant 0 : i32
    return %c0_i32, %c0_i32_0 : i32, i32
  }
  func.func @transform_12(%arg0: i32) -> (i32, i32) {
    %c0_i32 = arith.constant 0 : i32
    %c0_i32_0 = arith.constant 0 : i32
    %c0_i32_1 = arith.constant 0 : i32
    return %c0_i32, %c0_i32_0 : i32, i32
  }
  func.func @transform_13(%arg0: i32) -> (i32, i32) {
    %c0_i32 = arith.constant 0 : i32
    %c0_i32_0 = arith.constant 0 : i32
    %c0_i32_1 = arith.constant 0 : i32
    return %c0_i32, %c0_i32_0 : i32, i32
  }
  func.func @transform_14(%arg0: i32) -> (i32, i32) {
    %c0_i32 = arith.constant 0 : i32
    %c0_i32_0 = arith.constant 0 : i32
    %c0_i32_1 = arith.constant 0 : i32
    return %c0_i32, %c0_i32_0 : i32, i32
  }
  func.func @transform_15(%arg0: i32) -> (i32, i32) {
    %c0_i32 = arith.constant 0 : i32
    %c0_i32_0 = arith.constant 0 : i32
    %c0_i32_1 = arith.constant 0 : i32
    return %c0_i32, %c0_i32_0 : i32, i32
  }
  func.func @transform_16(%arg0: i32) -> (i32, i32) {
    %c0_i32 = arith.constant 0 : i32
    %c0_i32_0 = arith.constant 0 : i32
    %c0_i32_1 = arith.constant 0 : i32
    return %c0_i32, %c0_i32_0 : i32, i32
  }
  func.func @transform_17(%arg0: i32) -> (i32, i32) {
    %c0_i32 = arith.constant 0 : i32
    %c0_i32_0 = arith.constant 0 : i32
    %c0_i32_1 = arith.constant 0 : i32
    return %c0_i32, %c0_i32_0 : i32, i32
  }
  func.func @transform_18(%arg0: i32) -> (i32, i32, i32) {
    %c0_i32 = arith.constant 0 : i32
    %c0_i32_0 = arith.constant 0 : i32
    %c0_i32_1 = arith.constant 0 : i32
    return %arg0, %c0_i32, %c0_i32_0 : i32, i32, i32
  }
}

</mosaic_0001>

<llo_original>
// kernel: tpu_custom_call.1
$region0: #{tpu_custom_call.1}
  #allocation0 [shape = 'u32[]', space=smem, size = 0x4, offset = 0x4, fixed_abs, tag = 'smem constant byte address 0x4 - core index']
  #allocation1 [shape = 'u32[144,128]{1,0:T(1,128)}', space=vmem, size = 0x12000, scoped, tag = 'internal scratch']
  %s0 = inlined_call_operand.vmem [shape: f32[2,16,32], index: 0, kind: input, shape index: {}]
  %s1 = inlined_call_operand.vmem [shape: bf16[2,160,32], index: 1, kind: input, shape index: {}]
  %s2 = inlined_call_operand.vmem [shape: f32[2,1,32], index: 2, kind: input, shape index: {}]
  %s3 = inlined_call_operand.vmem [shape: bf16[32,32], index: 3, kind: input, shape index: {}]
  %s4 = inlined_call_operand.vmem [shape: f32[1,32], index: 4, kind: input, shape index: {}]
  %s5 = inlined_call_operand.vmem [shape: bf16[32,32], index: 5, kind: input, shape index: {}]
  %s6 = inlined_call_operand.vmem [shape: f32[1,32], index: 6, kind: input, shape index: {}]
  %s7 = inlined_call_operand.vmem [shape: bf16[32,32], index: 7, kind: input, shape index: {}]
  %s8 = inlined_call_operand.vmem [shape: f32[1,32], index: 8, kind: input, shape index: {}]
  %s9 = inlined_call_operand.vmem [shape: bf16[32,32], index: 9, kind: input, shape index: {}]
  %s10 = inlined_call_operand.vmem [shape: f32[1,32], index: 10, kind: input, shape index: {}]
  %s11 = inlined_call_operand.vmem [shape: bf16[32,64], index: 11, kind: input, shape index: {}]
  %s12 = inlined_call_operand.vmem [shape: f32[1,64], index: 12, kind: input, shape index: {}]
  %s13 = inlined_call_operand.vmem [shape: bf16[64,32], index: 13, kind: input, shape index: {}]
  %s14 = inlined_call_operand.vmem [shape: f32[1,32], index: 14, kind: input, shape index: {}]
  %s15 = inlined_call_operand.vmem [shape: f32[256,32], index: 15, kind: input, shape index: {}]
  %s16 = inlined_call_operand.vmem [shape: bf16[256,16], index: 16, kind: input, shape index: {}]
  %s17 = inlined_call_operand.vmem [shape: bf16[16,32], index: 17, kind: input, shape index: {}]
  %s18 = inlined_call_operand.hbm [shape: f32[1,32,32], index: 18, kind: output, shape index: {}]
  %s19 = sld [smem:[#allocation0]]
  $region82: #{tpu_custom_call.1} parent=0
    _
  %s21 = ssub.s32 1, %s19
  %s22 = scalar_select 0, %s21, %s19
  $region1: #{tpu_custom_call.1} parent=0
    #allocation2 [shape = 'u8[16384]{0}', space=vmem, size = 0x4000, scoped, tag = 'output window, operand 0, single buffered']
    #allocation3 [shape = 's32[1]{0}', space=sflag, size = 0x4, scoped, tag = 'scoped memory for tpu_custom_call.1']
    %23 = vsyncpa [#allocation3], 0
    // Predicated region
    $region2: #{tpu_custom_call.1} parent=1 // pred_check
      _
    $region3: #{tpu_custom_call.1} parent=1 // pred_check_branch
      %25 = sbr.rel (0) target = $region5
    $region4: #{tpu_custom_call.1} parent=1 // pred_region
      _
    $region5: #{tpu_custom_call.1} parent=1 // pred_fallthru
      _
    // Predicated region
    $region6: #{tpu_custom_call.1} parent=1 // pred_check
      _
    $region7: #{tpu_custom_call.1} parent=1 // pred_check_branch
      %27 = sbr.rel (0) target = $region9
    $region8: #{tpu_custom_call.1} parent=1 // pred_region
      _
    $region9: #{tpu_custom_call.1} parent=1 // pred_fallthru
      _
    // Predicated region
    $region10: #{tpu_custom_call.1} parent=1 // pred_check
      _
    $region11: #{tpu_custom_call.1} parent=1 // pred_check_branch
      %29 = sbr.rel (0) target = $region13
    $region12: #{tpu_custom_call.1} parent=1 // pred_region
      _
    $region13: #{tpu_custom_call.1} parent=1 // pred_fallthru
      _
    // Predicated region
    $region14: #{tpu_custom_call.1} parent=1 // pred_check
      _
    $region15: #{tpu_custom_call.1} parent=1 // pred_check_branch
      %31 = sbr.rel (0) target = $region17
    $region16: #{tpu_custom_call.1} parent=1 // pred_region
      _
    $region17: #{tpu_custom_call.1} parent=1 // pred_fallthru
      _
    // Predicated region
    $region18: #{tpu_custom_call.1} parent=1 // pred_check
      _
    $region19: #{tpu_custom_call.1} parent=1 // pred_check_branch
      %33 = sbr.rel (0) target = $region21
    $region20: #{tpu_custom_call.1} parent=1 // pred_region
      _
    $region21: #{tpu_custom_call.1} parent=1 // pred_fallthru
      _
    // Predicated region
    $region22: #{tpu_custom_call.1} parent=1 // pred_check
      _
    $region23: #{tpu_custom_call.1} parent=1 // pred_check_branch
      %35 = sbr.rel (0) target = $region25
    $region24: #{tpu_custom_call.1} parent=1 // pred_region
      _
    $region25: #{tpu_custom_call.1} parent=1 // pred_fallthru
      _
    // Predicated region
    $region26: #{tpu_custom_call.1} parent=1 // pred_check
      _
    $region27: #{tpu_custom_call.1} parent=1 // pred_check_branch
      %37 = sbr.rel (0) target = $region29
    $region28: #{tpu_custom_call.1} parent=1 // pred_region
      _
    $region29: #{tpu_custom_call.1} parent=1 // pred_fallthru
      _
    // Predicated region
    $region30: #{tpu_custom_call.1} parent=1 // pred_check
      _
    $region31: #{tpu_custom_call.1} parent=1 // pred_check_branch
      %39 = sbr.rel (0) target = $region33
    $region32: #{tpu_custom_call.1} parent=1 // pred_region
      _
    $region33: #{tpu_custom_call.1} parent=1 // pred_fallthru
      _
    // Predicated region
    $region34: #{tpu_custom_call.1} parent=1 // pred_check
      _
    $region35: #{tpu_custom_call.1} parent=1 // pred_check_branch
      %41 = sbr.rel (0) target = $region37
    $region36: #{tpu_custom_call.1} parent=1 // pred_region
      _
    $region37: #{tpu_custom_call.1} parent=1 // pred_fallthru
      _
    // Predicated region
    $region38: #{tpu_custom_call.1} parent=1 // pred_check
      _
    $region39: #{tpu_custom_call.1} parent=1 // pred_check_branch
      %43 = sbr.rel (0) target = $region41
    $region40: #{tpu_custom_call.1} parent=1 // pred_region
      _
    $region41: #{tpu_custom_call.1} parent=1 // pred_fallthru
      _
    // Predicated region
    $region42: #{tpu_custom_call.1} parent=1 // pred_check
      _
    $region43: #{tpu_custom_call.1} parent=1 // pred_check_branch
      %45 = sbr.rel (0) target = $region45
    $region44: #{tpu_custom_call.1} parent=1 // pred_region
      _
    $region45: #{tpu_custom_call.1} parent=1 // pred_fallthru
      _
    // Predicated region
    $region46: #{tpu_custom_call.1} parent=1 // pred_check
      _
    $region47: #{tpu_custom_call.1} parent=1 // pred_check_branch
      %47 = sbr.rel (0) target = $region49
    $region48: #{tpu_custom_call.1} parent=1 // pred_region
      _
    $region49: #{tpu_custom_call.1} parent=1 // pred_fallthru
      _
    // Predicated region
    $region50: #{tpu_custom_call.1} parent=1 // pred_check
      _
    $region51: #{tpu_custom_call.1} parent=1 // pred_check_branch
      %49 = sbr.rel (0) target = $region53
    $region52: #{tpu_custom_call.1} parent=1 // pred_region
      _
    $region53: #{tpu_custom_call.1} parent=1 // pred_fallthru
      _
    // Predicated region
    $region54: #{tpu_custom_call.1} parent=1 // pred_check
      _
    $region55: #{tpu_custom_call.1} parent=1 // pred_check_branch
      %51 = sbr.rel (0) target = $region57
    $region56: #{tpu_custom_call.1} parent=1 // pred_region
      _
    $region57: #{tpu_custom_call.1} parent=1 // pred_fallthru
      _
    // Predicated region
    $region58: #{tpu_custom_call.1} parent=1 // pred_check
      _
    $region59: #{tpu_custom_call.1} parent=1 // pred_check_branch
      %53 = sbr.rel (0) target = $region61
    $region60: #{tpu_custom_call.1} parent=1 // pred_region
      _
    $region61: #{tpu_custom_call.1} parent=1 // pred_fallthru
      _
    // Predicated region
    $region62: #{tpu_custom_call.1} parent=1 // pred_check
      _
    $region63: #{tpu_custom_call.1} parent=1 // pred_check_branch
      %55 = sbr.rel (0) target = $region65
    $region64: #{tpu_custom_call.1} parent=1 // pred_region
      _
    $region65: #{tpu_custom_call.1} parent=1 // pred_fallthru
      _
    // Predicated region
    $region66: #{tpu_custom_call.1} parent=1 // pred_check
      _
    $region67: #{tpu_custom_call.1} parent=1 // pred_check_branch
      %57 = sbr.rel (0) target = $region69
    $region68: #{tpu_custom_call.1} parent=1 // pred_region
      _
    $region69: #{tpu_custom_call.1} parent=1 // pred_fallthru
      _
    // Predicated region
    $region70: #{tpu_custom_call.1} parent=1 // pred_check
      _
    $region71: #{tpu_custom_call.1} parent=1 // pred_check_branch
      %59 = sbr.rel (0) target = $region73
    $region72: #{tpu_custom_call.1} parent=1 // pred_region
      _
    $region73: #{tpu_custom_call.1} parent=1 // pred_fallthru
      _
    %v61 = vld [vmem:[%s0] sm:$0xff]
    %v62 = vld [vmem:[%s0 + $0x8] sm:$0xff]
    %v63 = vld [vmem:[%s0 + $0x10] sm:$0xff]
    %v64 = vld [vmem:[%s0 + $0x18] sm:$0xff]
    %vm69 = vcmask 1041408
    %v70 = vrot.slane %v61, 6
    %v71 = vrot.slane %v62, 6
    %v72 = vsel %vm69, %v70, %v71
    %v73 = vrot.slane %v63, 6
    %v74 = vrot.slane %v64, 6
    %v75 = vsel %vm69, %v73, %v74
    %v82 = vsel %vm69, 0.0, %v70
    %v83 = vsel %vm69, 0.0, %v73
    %v84 = vsel %vm69, %v71, 0.0
    %v85 = vsel %vm69, %v74, 0.0
    %vm90 = vcmask 1046528
    %v91 = vrot.slane %v82, 1
    %v92 = vrot.slane %v72, 1
    %v93 = vsel %vm90, %v91, %v92
    %v94 = vrot.slane %v84, 1
    %v95 = vsel %vm90, %v92, %v94
    %v96 = vrot.slane %v83, 1
    %v97 = vrot.slane %v75, 1
    %v98 = vsel %vm90, %v96, %v97
    %v99 = vrot.slane %v85, 1
    %v100 = vsel %vm90, %v97, %v99
    %101 = vrot.lane.b32.xlu0 %v93, 32
    %v102 = vpop.permute.xlu0 %101
    %103 = vrot.lane.b32.xlu0 %v95, 32
    %v104 = vpop.permute.xlu0 %103
    %105 = vrot.lane.b32.xlu0 %v98, 32
    %v106 = vpop.permute.xlu0 %105
    %107 = vrot.lane.b32.xlu0 %v100, 32
    %v108 = vpop.permute.xlu0 %107
    %vm113 = vcmask 1045504
    %v114 = vrot.slane %v82, 2
    %v115 = vrot.slane %v72, 2
    %v116 = vsel %vm113, %v114, %v115
    %v117 = vrot.slane %v84, 2
    %v118 = vsel %vm113, %v115, %v117
    %v119 = vrot.slane %v83, 2
    %v120 = vrot.slane %v75, 2
    %v121 = vsel %vm113, %v119, %v120
    %v122 = vrot.slane %v85, 2
    %v123 = vsel %vm113, %v120, %v122
    %124 = vrot.lane.b32.xlu0 %v116, 64
    %v125 = vpop.permute.xlu0 %124
    %126 = vrot.lane.b32.xlu0 %v118, 64
    %v127 = vpop.permute.xlu0 %126
    %128 = vrot.lane.b32.xlu0 %v121, 64
    %v129 = vpop.permute.xlu0 %128
    %130 = vrot.lane.b32.xlu0 %v123, 64
    %v131 = vpop.permute.xlu0 %130
    %vm136 = vcmask 1044480
    %v137 = vrot.slane %v82, 3
    %v138 = vrot.slane %v72, 3
    %v139 = vsel %vm136, %v137, %v138
    %v140 = vrot.slane %v84, 3
    %v141 = vsel %vm136, %v138, %v140
    %v142 = vrot.slane %v83, 3
    %v143 = vrot.slane %v75, 3
    %v144 = vsel %vm136, %v142, %v143
    %v145 = vrot.slane %v85, 3
    %v146 = vsel %vm136, %v143, %v145
    %147 = vrot.lane.b32.xlu0 %v139, 96
    %v148 = vpop.permute.xlu0 %147
    %149 = vrot.lane.b32.xlu0 %v141, 96
    %v150 = vpop.permute.xlu0 %149
    %151 = vrot.lane.b32.xlu0 %v144, 96
    %v152 = vpop.permute.xlu0 %151
    %153 = vrot.lane.b32.xlu0 %v146, 96
    %v154 = vpop.permute.xlu0 %153
    %vm159 = vcmask 1043456
    %v160 = vrot.slane %v82, 4
    %v161 = vrot.slane %v72, 4
    %v162 = vsel %vm159, %v160, %v161
    %v163 = vrot.slane %v84, 4
    %v164 = vsel %vm159, %v161, %v163
    %v165 = vrot.slane %v83, 4
    %v166 = vrot.slane %v75, 4
    %v167 = vsel %vm159, %v165, %v166
    %v168 = vrot.slane %v85, 4
    %v169 = vsel %vm159, %v166, %v168
    %vm174 = vcmask 261120
    %v175 = vsel %vm174, %v82, %v102
    %v176 = vsel %vm174, %v72, %v104
    %v177 = vsel %vm174, %v83, %v106
    %v178 = vsel %vm174, %v75, %v108
    %vm179 = vcmask 523264
    %v180 = vsel %vm179, %v175, %v125
    %v181 = vsel %vm179, %v176, %v127
    %v182 = vsel %vm179, %v177, %v129
    %v183 = vsel %vm179, %v178, %v131
    %vm184 = vcmask 785408
    %v185 = vsel %vm184, %v180, %v148
    %v186 = vsel %vm184, %v181, %v150
    %v187 = vsel %vm184, %v182, %v152
    %v188 = vsel %vm184, %v183, %v154
    %v189 = vpack.c.bf16 %v186, %v185
    %v190 = vpack.c.bf16 %v164, %v162
    %v191 = vpack.c.bf16 %v188, %v187
    %v192 = vpack.c.bf16 %v169, %v167
    %v193 = vld [vmem:[%s1] sm:$0xf]
    %v194 = vld [vmem:[%s1 + $0x4] sm:$0xf]
    %v195 = vld [vmem:[%s1 + $0x8] sm:$0xf]
    %v196 = vld [vmem:[%s1 + $0xc] sm:$0xf]
    %v197 = vld [vmem:[%s1 + $0x10] sm:$0xf]
    %v198 = vld [vmem:[%s1 + $0x14] sm:$0xf]
    %v199 = vld [vmem:[%s1 + $0x18] sm:$0xf]
    %v200 = vld [vmem:[%s1 + $0x1c] sm:$0xf]
    %v201 = vld [vmem:[%s1 + $0x20] sm:$0xf]
    %v202 = vld [vmem:[%s1 + $0x24] sm:$0xf]
    %v203 = vld [vmem:[%s1 + $0x28] sm:$0xf]
    %v204 = vld [vmem:[%s1 + $0x2c] sm:$0xf]
    %v205 = vld [vmem:[%s1 + $0x30] sm:$0xf]
    %v206 = vld [vmem:[%s1 + $0x34] sm:$0xf]
    %v207 = vld [vmem:[%s1 + $0x38] sm:$0xf]
    %v208 = vld [vmem:[%s1 + $0x3c] sm:$0xf]
    %v209 = vld [vmem:[%s1 + $0x40] sm:$0xf]
    %v210 = vld [vmem:[%s1 + $0x44] sm:$0xf]
    %v211 = vld [vmem:[%s1 + $0x48] sm:$0xf]
    %v212 = vld [vmem:[%s1 + $0x4c] sm:$0xf]
    %v213 = vld [vmem:[%s2] sm:$0x1]
    %v215 = vlaneseq
    %v216 = vshrl.u32 %v215, 7
    %v217 = vsub.s32 0, %v216
    %v218 = vrot.slane %v213, %v217
    %v240 = vunpack.c.l.b16 %v193
    %v241 = vunpack.c.l.b16 %v194
    %v242 = vunpack.c.l.b16 %v195
    %v243 = vunpack.c.l.b16 %v196
    %v244 = vunpack.c.l.b16 %v197
    %v245 = vunpack.c.l.b16 %v198
    %v246 = vunpack.c.l.b16 %v199
    %v247 = vunpack.c.l.b16 %v200
    %v248 = vunpack.c.l.b16 %v201
    %v249 = vunpack.c.l.b16 %v202
    %v250 = vunpack.c.l.b16 %v203
    %v251 = vunpack.c.l.b16 %v204
    %v252 = vunpack.c.l.b16 %v205
    %v253 = vunpack.c.l.b16 %v206
    %v254 = vunpack.c.l.b16 %v207
    %v255 = vunpack.c.l.b16 %v208
    %v256 = vunpack.c.l.b16 %v209
    %v257 = vunpack.c.l.b16 %v210
    %v258 = vunpack.c.l.b16 %v211
    %v259 = vunpack.c.l.b16 %v212
    %v260 = vpack.c.b16 %v241, %v240
    %v261 = vpack.c.b16 %v243, %v242
    %v262 = vpack.c.b16 %v245, %v244
    %v263 = vpack.c.b16 %v247, %v246
    %v264 = vpack.c.b16 %v249, %v248
    %v265 = vpack.c.b16 %v251, %v250
    %v266 = vpack.c.b16 %v253, %v252
    %v267 = vpack.c.b16 %v255, %v254
    %v268 = vpack.c.b16 %v257, %v256
    %v269 = vpack.c.b16 %v259, %v258
    %v281 = vsel %vm174, %v190, 0
    %v284 = vsel %vm174, %v192, 0
    %286 = vmatprep.subr.bf16.mxu0 0
    %287 = vmatpush1.bf16.msra.mxu0 %v260
    %288 = vmatprep.subr.bf16.mxu0 0
    %289 = vmatpush1.bf16.msra.mxu0 %v261
    %290 = vmatprep.subr.bf16.mxu0 0
    %291 = vmatpush1.bf16.msra.mxu0 %v262
    %292 = vmatprep.subr.bf16.mxu0 0
    %293 = vmatpush1.bf16.msra.mxu0 %v263
    %294 = vmatprep.subr.bf16.mxu0 0
    %295 = vmatpush1.bf16.msra.mxu0 %v264
    %296 = vmatprep.subr.bf16.mxu0 0
    %297 = vmatpush1.bf16.msra.mxu0 %v265
    %298 = vmatprep.subr.bf16.mxu0 0
    %299 = vmatpush1.bf16.msra.mxu0 %v266
    %300 = vmatprep.subr.bf16.mxu0 0
    %301 = vmatpush1.bf16.msra.mxu0 %v267
    %302 = vmatprep.subr.bf16.mxu0 0
    %303 = vmatpush1.bf16.msra.mxu0 %v268
    %304 = vmatprep.subr.bf16.mxu0 0
    %305 = vmatpush1.bf16.msra.mxu0 %v269
    %306 = vmatprep.subr.bf16.mxu0 0
    %307 = vmatpush1.bf16.msra.mxu0 0
    %308 = vmatprep.subr.bf16.mxu0 0
    %309 = vmatpush1.bf16.msra.mxu0 0
    %310 = vmatprep.subr.bf16.mxu0 0
    %311 = vmatpush1.bf16.msra.mxu0 0
    %312 = vmatprep.subr.bf16.mxu0 0
    %313 = vmatpush1.bf16.msra.mxu0 0
    %314 = vmatprep.subr.bf16.mxu0 0
    %315 = vmatpush1.bf16.msra.mxu0 0
    %316 = vmatprep.subr.bf16.mxu0 0
    %317 = vmatpush1.bf16.msra.mxu0 0
    %318 = vmatprep.mubr.bf16.mxu0 %v281
    %319 = vmatmul.mubr.bf16.gmra.mrb[0].mxu0 %v189
    %v320 = vpop.f32.mrb[0].mxu0
    %v321 = vadd.f32 %v218, %v320
    %v322 = vpop.f32.mrb[0].mxu0
    %v323 = vpop.f32.mrb[0].mxu0
    %v324 = vadd.f32 %v218, %v323
    %v325 = vpop.f32.mrb[0].mxu0
    %326 = vmatprep.mubr.bf16.mxu0 %v284
    %327 = vmatmul.mubr.bf16.gmra.mrb[0].mxu0 %v191
    %v328 = vpop.f32.mrb[0].mxu0
    %v329 = vadd.f32 %v218, %v328
    %v330 = vpop.f32.mrb[0].mxu0
    %v331 = vpop.f32.mrb[0].mxu0
    %v332 = vadd.f32 %v218, %v331
    %v333 = vpop.f32.mrb[0].mxu0
    %334 = vdwg.mxu0
    %v335 = vmax.f32 %v321, 0.0
    %v336 = vmax.f32 %v324, 0.0
    %v337 = vmax.f32 %v329, 0.0
    %v338 = vmax.f32 %v332, 0.0
    %v343 = vrot.slane %v335, 6
    %v344 = vrot.slane %v336, 6
    %v345 = vsel %vm69, %v343, %v344
    %v346 = vrot.slane %v337, 6
    %v347 = vrot.slane %v338, 6
    %v348 = vsel %vm69, %v346, %v347
    %v355 = vsel %vm69, 0.0, %v343
    %v356 = vsel %vm69, 0.0, %v346
    %v357 = vsel %vm69, %v344, 0.0
    %v358 = vsel %vm69, %v347, 0.0
    %v363 = vrot.slane %v355, 1
    %v364 = vrot.slane %v345, 1
    %v365 = vsel %vm90, %v363, %v364
    %v366 = vrot.slane %v357, 1
    %v367 = vsel %vm90, %v364, %v366
    %v368 = vrot.slane %v356, 1
    %v369 = vrot.slane %v348, 1
    %v370 = vsel %vm90, %v368, %v369
    %v371 = vrot.slane %v358, 1
    %v372 = vsel %vm90, %v369, %v371
    %373 = vrot.lane.b32.xlu0 %v365, 32
    %v374 = vpop.permute.xlu0 %373
    %375 = vrot.lane.b32.xlu0 %v367, 32
    %v376 = vpop.permute.xlu0 %375
    %377 = vrot.lane.b32.xlu0 %v370, 32
    %v378 = vpop.permute.xlu0 %377
    %379 = vrot.lane.b32.xlu0 %v372, 32
    %v380 = vpop.permute.xlu0 %379
    %v385 = vrot.slane %v355, 2
    %v386 = vrot.slane %v345, 2
    %v387 = vsel %vm113, %v385, %v386
    %v388 = vrot.slane %v357, 2
    %v389 = vsel %vm113, %v386, %v388
    %v390 = vrot.slane %v356, 2
    %v391 = vrot.slane %v348, 2
    %v392 = vsel %vm113, %v390, %v391
    %v393 = vrot.slane %v358, 2
    %v394 = vsel %vm113, %v391, %v393
    %395 = vrot.lane.b32.xlu0 %v387, 64
    %v396 = vpop.permute.xlu0 %395
    %397 = vrot.lane.b32.xlu0 %v389, 64
    %v398 = vpop.permute.xlu0 %397
    %399 = vrot.lane.b32.xlu0 %v392, 64
    %v400 = vpop.permute.xlu0 %399
    %401 = vrot.lane.b32.xlu0 %v394, 64
    %v402 = vpop.permute.xlu0 %401
    %v407 = vrot.slane %v355, 3
    %v408 = vrot.slane %v345, 3
    %v409 = vsel %vm136, %v407, %v408
    %v410 = vrot.slane %v357, 3
    %v411 = vsel %vm136, %v408, %v410
    %v412 = vrot.slane %v356, 3
    %v413 = vrot.slane %v348, 3
    %v414 = vsel %vm136, %v412, %v413
    %v415 = vrot.slane %v358, 3
    %v416 = vsel %vm136, %v413, %v415
    %417 = vrot.lane.b32.xlu0 %v409, 96
    %v418 = vpop.permute.xlu0 %417
    %419 = vrot.lane.b32.xlu0 %v411, 96
    %v420 = vpop.permute.xlu0 %419
    %421 = vrot.lane.b32.xlu0 %v414, 96
    %v422 = vpop.permute.xlu0 %421
    %423 = vrot.lane.b32.xlu0 %v416, 96
    %v424 = vpop.permute.xlu0 %423
    %v429 = vrot.slane %v355, 4
    %v430 = vrot.slane %v345, 4
    %v431 = vsel %vm159, %v429, %v430
    %v432 = vrot.slane %v357, 4
    %v433 = vsel %vm159, %v430, %v432
    %v434 = vrot.slane %v356, 4
    %v435 = vrot.slane %v348, 4
    %v436 = vsel %vm159, %v434, %v435
    %v437 = vrot.slane %v358, 4
    %v438 = vsel %vm159, %v435, %v437
    %v443 = vsel %vm174, %v355, %v374
    %v444 = vsel %vm174, %v345, %v376
    %v445 = vsel %vm174, %v356, %v378
    %v446 = vsel %vm174, %v348, %v380
    %v447 = vsel %vm179, %v443, %v396
    %v448 = vsel %vm179, %v444, %v398
    %v449 = vsel %vm179, %v445, %v400
    %v450 = vsel %vm179, %v446, %v402
    %v451 = vsel %vm184, %v447, %v418
    %v452 = vsel %vm184, %v448, %v420
    %v453 = vsel %vm184, %v449, %v422
    %v454 = vsel %vm184, %v450, %v424
    %v455 = vpack.c.bf16 %v452, %v451
    %v456 = vpack.c.bf16 %v433, %v431
    %v457 = vpack.c.bf16 %v454, %v453
    %v458 = vpack.c.bf16 %v438, %v436
    %s459 = scalar_lea.vmem %s1, 80
    %v460 = vld [vmem:[%s459] sm:$0xf]
    %v461 = vld [vmem:[%s459 + $0x4] sm:$0xf]
    %v462 = vld [vmem:[%s459 + $0x8] sm:$0xf]
    %v463 = vld [vmem:[%s459 + $0xc] sm:$0xf]
    %v464 = vld [vmem:[%s459 + $0x10] sm:$0xf]
    %v465 = vld [vmem:[%s459 + $0x14] sm:$0xf]
    %v466 = vld [vmem:[%s459 + $0x18] sm:$0xf]
    %v467 = vld [vmem:[%s459 + $0x1c] sm:$0xf]
    %v468 = vld [vmem:[%s459 + $0x20] sm:$0xf]
    %v469 = vld [vmem:[%s459 + $0x24] sm:$0xf]
    %v470 = vld [vmem:[%s459 + $0x28] sm:$0xf]
    %v471 = vld [vmem:[%s459 + $0x2c] sm:$0xf]
    %v472 = vld [vmem:[%s459 + $0x30] sm:$0xf]
    %v473 = vld [vmem:[%s459 + $0x34] sm:$0xf]
    %v474 = vld [vmem:[%s459 + $0x38] sm:$0xf]
    %v475 = vld [vmem:[%s459 + $0x3c] sm:$0xf]
    %v476 = vld [vmem:[%s459 + $0x40] sm:$0xf]
    %v477 = vld [vmem:[%s459 + $0x44] sm:$0xf]
    %v478 = vld [vmem:[%s459 + $0x48] sm:$0xf]
    %v479 = vld [vmem:[%s459 + $0x4c] sm:$0xf]
    %s480 = scalar_lea.vmem %s2, 1
    %v481 = vld [vmem:[%s480] sm:$0x1]
    %v483 = vlaneseq
    %v484 = vshrl.u32 %v483, 7
    %v485 = vsub.s32 0, %v484
    %v486 = vrot.slane %v481, %v485
    %v508 = vunpack.c.l.b16 %v460
    %v509 = vunpack.c.l.b16 %v461
    %v510 = vunpack.c.l.b16 %v462
    %v511 = vunpack.c.l.b16 %v463
    %v512 = vunpack.c.l.b16 %v464
    %v513 = vunpack.c.l.b16 %v465
    %v514 = vunpack.c.l.b16 %v466
    %v515 = vunpack.c.l.b16 %v467
    %v516 = vunpack.c.l.b16 %v468
    %v517 = vunpack.c.l.b16 %v469
    %v518 = vunpack.c.l.b16 %v470
    %v519 = vunpack.c.l.b16 %v471
    %v520 = vunpack.c.l.b16 %v472
    %v521 = vunpack.c.l.b16 %v473
    %v522 = vunpack.c.l.b16 %v474
    %v523 = vunpack.c.l.b16 %v475
    %v524 = vunpack.c.l.b16 %v476
    %v525 = vunpack.c.l.b16 %v477
    %v526 = vunpack.c.l.b16 %v478
    %v527 = vunpack.c.l.b16 %v479
    %v528 = vpack.c.b16 %v509, %v508
    %v529 = vpack.c.b16 %v511, %v510
    %v530 = vpack.c.b16 %v513, %v512
    %v531 = vpack.c.b16 %v515, %v514
    %v532 = vpack.c.b16 %v517, %v516
    %v533 = vpack.c.b16 %v519, %v518
    %v534 = vpack.c.b16 %v521, %v520
    %v535 = vpack.c.b16 %v523, %v522
    %v536 = vpack.c.b16 %v525, %v524
    %v537 = vpack.c.b16 %v527, %v526
    %v549 = vsel %vm174, %v456, 0
    %v552 = vsel %vm174, %v458, 0
    %554 = vmatprep.subr.bf16.mxu0 0
    %555 = vmatpush1.bf16.msra.mxu0 %v528
    %556 = vmatprep.subr.bf16.mxu0 0
    %557 = vmatpush1.bf16.msra.mxu0 %v529
    %558 = vmatprep.subr.bf16.mxu0 0
    %559 = vmatpush1.bf16.msra.mxu0 %v530
    %560 = vmatprep.subr.bf16.mxu0 0
    %561 = vmatpush1.bf16.msra.mxu0 %v531
    %562 = vmatprep.subr.bf16.mxu0 0
    %563 = vmatpush1.bf16.msra.mxu0 %v532
    %564 = vmatprep.subr.bf16.mxu0 0
    %565 = vmatpush1.bf16.msra.mxu0 %v533
    %566 = vmatprep.subr.bf16.mxu0 0
    %567 = vmatpush1.bf16.msra.mxu0 %v534
    %568 = vmatprep.subr.bf16.mxu0 0
    %569 = vmatpush1.bf16.msra.mxu0 %v535
    %570 = vmatprep.subr.bf16.mxu0 0
    %571 = vmatpush1.bf16.msra.mxu0 %v536
    %572 = vmatprep.subr.bf16.mxu0 0
    %573 = vmatpush1.bf16.msra.mxu0 %v537
    %574 = vmatprep.subr.bf16.mxu0 0
    %575 = vmatpush1.bf16.msra.mxu0 0
    %576 = vmatprep.subr.bf16.mxu0 0
    %577 = vmatpush1.bf16.msra.mxu0 0
    %578 = vmatprep.subr.bf16.mxu0 0
    %579 = vmatpush1.bf16.msra.mxu0 0
    %580 = vmatprep.subr.bf16.mxu0 0
    %581 = vmatpush1.bf16.msra.mxu0 0
    %582 = vmatprep.subr.bf16.mxu0 0
    %583 = vmatpush1.bf16.msra.mxu0 0
    %584 = vmatprep.subr.bf16.mxu0 0
    %585 = vmatpush1.bf16.msra.mxu0 0
    %586 = vmatprep.mubr.bf16.mxu0 %v549
    %587 = vmatmul.mubr.bf16.gmra.mrb[0].mxu0 %v455
    %v588 = vpop.f32.mrb[0].mxu0
    %v589 = vadd.f32 %v486, %v588
    %v590 = vpop.f32.mrb[0].mxu0
    %v591 = vpop.f32.mrb[0].mxu0
    %v592 = vadd.f32 %v486, %v591
    %v593 = vpop.f32.mrb[0].mxu0
    %594 = vmatprep.mubr.bf16.mxu0 %v552
    %595 = vmatmul.mubr.bf16.gmra.mrb[0].mxu0 %v457
    %v596 = vpop.f32.mrb[0].mxu0
    %v597 = vadd.f32 %v486, %v596
    %v598 = vpop.f32.mrb[0].mxu0
    %v599 = vpop.f32.mrb[0].mxu0
    %v600 = vadd.f32 %v486, %v599
    %v601 = vpop.f32.mrb[0].mxu0
    %602 = vdwg.mxu0
    %v603 = vmax.f32 %v589, 0.0
    %v604 = vmax.f32 %v592, 0.0
    %v605 = vmax.f32 %v597, 0.0
    %v606 = vmax.f32 %v600, 0.0
    %v607 = vpack.c.bf16 %v604, %v603
    %v608 = vpack.c.bf16 %v606, %v605
    %v609 = vld [vmem:[%s3] sm:$0xf]
    %v610 = vld [vmem:[%s3 + $0x4] sm:$0xf]
    %v611 = vld [vmem:[%s3 + $0x8] sm:$0xf]
    %v612 = vld [vmem:[%s3 + $0xc] sm:$0xf]
    %v613 = vld [vmem:[%s4] sm:$0x1]
    %v615 = vlaneseq
    %v616 = vshrl.u32 %v615, 7
    %v617 = vsub.s32 0, %v616
    %v618 = vrot.slane %v613, %v617
    %v624 = vunpack.c.l.b16 %v609
    %v625 = vunpack.c.l.b16 %v610
    %v626 = vunpack.c.l.b16 %v611
    %v627 = vunpack.c.l.b16 %v612
    %v628 = vpack.c.b16 %v625, %v624
    %v629 = vpack.c.b16 %v627, %v626
    %v633 = vsel %vm174, %v607, 0
    %v636 = vsel %vm174, %v608, 0
    %638 = vmatprep.subr.bf16.mxu0 0
    %639 = vmatpush1.bf16.msra.mxu0 %v628
    %640 = vmatprep.subr.bf16.mxu0 0
    %641 = vmatpush1.bf16.msra.mxu0 %v629
    %642 = vmatprep.subr.bf16.mxu0 0
    %643 = vmatpush1.bf16.msra.mxu0 0
    %644 = vmatprep.subr.bf16.mxu0 0
    %645 = vmatpush1.bf16.msra.mxu0 0
    %646 = vmatprep.subr.bf16.mxu0 0
    %647 = vmatpush1.bf16.msra.mxu0 0
    %648 = vmatprep.subr.bf16.mxu0 0
    %649 = vmatpush1.bf16.msra.mxu0 0
    %650 = vmatprep.subr.bf16.mxu0 0
    %651 = vmatpush1.bf16.msra.mxu0 0
    %652 = vmatprep.subr.bf16.mxu0 0
    %653 = vmatpush1.bf16.msra.mxu0 0
    %654 = vmatprep.subr.bf16.mxu0 0
    %655 = vmatpush1.bf16.msra.mxu0 0
    %656 = vmatprep.subr.bf16.mxu0 0
    %657 = vmatpush1.bf16.msra.mxu0 0
    %658 = vmatprep.subr.bf16.mxu0 0
    %659 = vmatpush1.bf16.msra.mxu0 0
    %660 = vmatprep.subr.bf16.mxu0 0
    %661 = vmatpush1.bf16.msra.mxu0 0
    %662 = vmatprep.subr.bf16.mxu0 0
    %663 = vmatpush1.bf16.msra.mxu0 0
    %664 = vmatprep.subr.bf16.mxu0 0
    %665 = vmatpush1.bf16.msra.mxu0 0
    %666 = vmatprep.subr.bf16.mxu0 0
    %667 = vmatpush1.bf16.msra.mxu0 0
    %668 = vmatprep.subr.bf16.mxu0 0
    %669 = vmatpush1.bf16.msra.mxu0 0
    %670 = vmatprep.mubr.bf16.mxu0 0
    %671 = vmatmul.mubr.bf16.gmra.mrb[0].mxu0 %v633
    %v672 = vpop.f32.mrb[0].mxu0
    %v673 = vadd.f32 %v618, %v672
    %v674 = vpop.f32.mrb[0].mxu0
    %v675 = vpop.f32.mrb[0].mxu0
    %v676 = vadd.f32 %v618, %v675
    %v677 = vpop.f32.mrb[0].mxu0
    %678 = vmatprep.mubr.bf16.mxu0 0
    %679 = vmatmul.mubr.bf16.gmra.mrb[0].mxu0 %v636
    %v680 = vpop.f32.mrb[0].mxu0
    %v681 = vadd.f32 %v618, %v680
    %v682 = vpop.f32.mrb[0].mxu0
    %v683 = vpop.f32.mrb[0].mxu0
    %v684 = vadd.f32 %v618, %v683
    %v685 = vpop.f32.mrb[0].mxu0
    %686 = vdwg.mxu0
    %v687 = vld [vmem:[%s5] sm:$0xf]
    %v688 = vld [vmem:[%s5 + $0x4] sm:$0xf]
    %v689 = vld [vmem:[%s5 + $0x8] sm:$0xf]
    %v690 = vld [vmem:[%s5 + $0xc] sm:$0xf]
    %v691 = vld [vmem:[%s6] sm:$0x1]
    %v693 = vlaneseq
    %v694 = vshrl.u32 %v693, 7
    %v695 = vsub.s32 0, %v694
    %v696 = vrot.slane %v691, %v695
    %v702 = vunpack.c.l.b16 %v687
    %v703 = vunpack.c.l.b16 %v688
    %v704 = vunpack.c.l.b16 %v689
    %v705 = vunpack.c.l.b16 %v690
    %v706 = vpack.c.b16 %v703, %v702
    %v707 = vpack.c.b16 %v705, %v704
    %710 = vmatprep.subr.bf16.mxu0 0
    %711 = vmatpush1.bf16.msra.mxu0 %v706
    %712 = vmatprep.subr.bf16.mxu0 0
    %713 = vmatpush1.bf16.msra.mxu0 %v707
    %714 = vmatprep.subr.bf16.mxu0 0
    %715 = vmatpush1.bf16.msra.mxu0 0
    %716 = vmatprep.subr.bf16.mxu0 0
    %717 = vmatpush1.bf16.msra.mxu0 0
    %718 = vmatprep.subr.bf16.mxu0 0
    %719 = vmatpush1.bf16.msra.mxu0 0
    %720 = vmatprep.subr.bf16.mxu0 0
    %721 = vmatpush1.bf16.msra.mxu0 0
    %722 = vmatprep.subr.bf16.mxu0 0
    %723 = vmatpush1.bf16.msra.mxu0 0
    %724 = vmatprep.subr.bf16.mxu0 0
    %725 = vmatpush1.bf16.msra.mxu0 0
    %726 = vmatprep.subr.bf16.mxu0 0
    %727 = vmatpush1.bf16.msra.mxu0 0
    %728 = vmatprep.subr.bf16.mxu0 0
    %729 = vmatpush1.bf16.msra.mxu0 0
    %730 = vmatprep.subr.bf16.mxu0 0
    %731 = vmatpush1.bf16.msra.mxu0 0
    %732 = vmatprep.subr.bf16.mxu0 0
    %733 = vmatpush1.bf16.msra.mxu0 0
    %734 = vmatprep.subr.bf16.mxu0 0
    %735 = vmatpush1.bf16.msra.mxu0 0
    %736 = vmatprep.subr.bf16.mxu0 0
    %737 = vmatpush1.bf16.msra.mxu0 0
    %738 = vmatprep.subr.bf16.mxu0 0
    %739 = vmatpush1.bf16.msra.mxu0 0
    %740 = vmatprep.subr.bf16.mxu0 0
    %741 = vmatpush1.bf16.msra.mxu0 0
    %742 = vmatprep.mubr.bf16.mxu0 0
    %743 = vmatmul.mubr.bf16.gmra.mrb[0].mxu0 %v633
    %v744 = vpop.f32.mrb[0].mxu0
    %v745 = vadd.f32 %v696, %v744
    %v746 = vpop.f32.mrb[0].mxu0
    %v747 = vpop.f32.mrb[0].mxu0
    %v748 = vadd.f32 %v696, %v747
    %v749 = vpop.f32.mrb[0].mxu0
    %750 = vmatprep.mubr.bf16.mxu0 0
    %751 = vmatmul.mubr.bf16.gmra.mrb[0].mxu0 %v636
    %v752 = vpop.f32.mrb[0].mxu0
    %v753 = vadd.f32 %v696, %v752
    %v754 = vpop.f32.mrb[0].mxu0
    %v755 = vpop.f32.mrb[0].mxu0
    %v756 = vadd.f32 %v696, %v755
    %v757 = vpop.f32.mrb[0].mxu0
    %758 = vdwg.mxu0
    %v759 = vld [vmem:[%s7] sm:$0xf]
    %v760 = vld [vmem:[%s7 + $0x4] sm:$0xf]
    %v761 = vld [vmem:[%s7 + $0x8] sm:$0xf]
    %v762 = vld [vmem:[%s7 + $0xc] sm:$0xf]
    %v763 = vld [vmem:[%s8] sm:$0x1]
    %v765 = vlaneseq
    %v766 = vshrl.u32 %v765, 7
    %v767 = vsub.s32 0, %v766
    %v768 = vrot.slane %v763, %v767
    %v774 = vunpack.c.l.b16 %v759
    %v775 = vunpack.c.l.b16 %v760
    %v776 = vunpack.c.l.b16 %v761
    %v777 = vunpack.c.l.b16 %v762
    %v778 = vpack.c.b16 %v775, %v774
    %v779 = vpack.c.b16 %v777, %v776
    %782 = vmatprep.subr.bf16.mxu0 0
    %783 = vmatpush1.bf16.msra.mxu0 %v778
    %784 = vmatprep.subr.bf16.mxu0 0
    %785 = vmatpush1.bf16.msra.mxu0 %v779
    %786 = vmatprep.subr.bf16.mxu0 0
    %787 = vmatpush1.bf16.msra.mxu0 0
    %788 = vmatprep.subr.bf16.mxu0 0
    %789 = vmatpush1.bf16.msra.mxu0 0
    %790 = vmatprep.subr.bf16.mxu0 0
    %791 = vmatpush1.bf16.msra.mxu0 0
    %792 = vmatprep.subr.bf16.mxu0 0
    %793 = vmatpush1.bf16.msra.mxu0 0
    %794 = vmatprep.subr.bf16.mxu0 0
    %795 = vmatpush1.bf16.msra.mxu0 0
    %796 = vmatprep.subr.bf16.mxu0 0
    %797 = vmatpush1.bf16.msra.mxu0 0
    %798 = vmatprep.subr.bf16.mxu0 0
    %799 = vmatpush1.bf16.msra.mxu0 0
    %800 = vmatprep.subr.bf16.mxu0 0
    %801 = vmatpush1.bf16.msra.mxu0 0
    %802 = vmatprep.subr.bf16.mxu0 0
    %803 = vmatpush1.bf16.msra.mxu0 0
    %804 = vmatprep.subr.bf16.mxu0 0
    %805 = vmatpush1.bf16.msra.mxu0 0
    %806 = vmatprep.subr.bf16.mxu0 0
    %807 = vmatpush1.bf16.msra.mxu0 0
    %808 = vmatprep.subr.bf16.mxu0 0
    %809 = vmatpush1.bf16.msra.mxu0 0
    %810 = vmatprep.subr.bf16.mxu0 0
    %811 = vmatpush1.bf16.msra.mxu0 0
    %812 = vmatprep.subr.bf16.mxu0 0
    %813 = vmatpush1.bf16.msra.mxu0 0
    %814 = vmatprep.mubr.bf16.mxu0 0
    %815 = vmatmul.mubr.bf16.gmra.mrb[0].mxu0 %v633
    %v816 = vpop.f32.mrb[0].mxu0
    %v817 = vadd.f32 %v768, %v816
    %v818 = vpop.f32.mrb[0].mxu0
    %v819 = vpop.f32.mrb[0].mxu0
    %v820 = vadd.f32 %v768, %v819
    %v821 = vpop.f32.mrb[0].mxu0
    %822 = vmatprep.mubr.bf16.mxu0 0
    %823 = vmatmul.mubr.bf16.gmra.mrb[0].mxu0 %v636
    %v824 = vpop.f32.mrb[0].mxu0
    %v825 = vadd.f32 %v768, %v824
    %v826 = vpop.f32.mrb[0].mxu0
    %v827 = vpop.f32.mrb[0].mxu0
    %v828 = vadd.f32 %v768, %v827
    %v829 = vpop.f32.mrb[0].mxu0
    %830 = vdwg.mxu0
    %v831 = vpack.c.bf16 %v676, %v673
    %v832 = vpack.c.bf16 %v684, %v681
    %v833 = vld [vmem:[%s15] sm:$0xff]
    %v834 = vld [vmem:[%s15 + $0x8] sm:$0xff]
    %v835 = vld [vmem:[%s15 + $0x10] sm:$0xff]
    %v836 = vld [vmem:[%s15 + $0x18] sm:$0xff]
    %v837 = vld [vmem:[%s15 + $0x20] sm:$0xff]
    %v838 = vld [vmem:[%s15 + $0x28] sm:$0xff]
    %v839 = vld [vmem:[%s15 + $0x30] sm:$0xff]
    %v840 = vld [vmem:[%s15 + $0x38] sm:$0xff]
    %v841 = vld [vmem:[%s15 + $0x40] sm:$0xff]
    %v842 = vld [vmem:[%s15 + $0x48] sm:$0xff]
    %v843 = vld [vmem:[%s15 + $0x50] sm:$0xff]
    %v844 = vld [vmem:[%s15 + $0x58] sm:$0xff]
    %v845 = vld [vmem:[%s15 + $0x60] sm:$0xff]
    %v846 = vld [vmem:[%s15 + $0x68] sm:$0xff]
    %v847 = vld [vmem:[%s15 + $0x70] sm:$0xff]
    %v848 = vld [vmem:[%s15 + $0x78] sm:$0xff]
    %v849 = vld [vmem:[%s15 + $0x80] sm:$0xff]
    %v850 = vld [vmem:[%s15 + $0x88] sm:$0xff]
    %v851 = vld [vmem:[%s15 + $0x90] sm:$0xff]
    %v852 = vld [vmem:[%s15 + $0x98] sm:$0xff]
    %v853 = vld [vmem:[%s15 + $0xa0] sm:$0xff]
    %v854 = vld [vmem:[%s15 + $0xa8] sm:$0xff]
    %v855 = vld [vmem:[%s15 + $0xb0] sm:$0xff]
    %v856 = vld [vmem:[%s15 + $0xb8] sm:$0xff]
    %v857 = vld [vmem:[%s15 + $0xc0] sm:$0xff]
    %v858 = vld [vmem:[%s15 + $0xc8] sm:$0xff]
    %v859 = vld [vmem:[%s15 + $0xd0] sm:$0xff]
    %v860 = vld [vmem:[%s15 + $0xd8] sm:$0xff]
    %v861 = vld [vmem:[%s15 + $0xe0] sm:$0xff]
    %v862 = vld [vmem:[%s15 + $0xe8] sm:$0xff]
    %v863 = vld [vmem:[%s15 + $0xf0] sm:$0xff]
    %v864 = vld [vmem:[%s15 + $0xf8] sm:$0xff]
    %v865 = vmul.f32 %v745, %v833
    %v866 = vmul.f32 %v748, %v834
    %v867 = vmul.f32 %v745, %v835
    %v868 = vmul.f32 %v748, %v836
    %v869 = vmul.f32 %v745, %v837
    %v870 = vmul.f32 %v748, %v838
    %v871 = vmul.f32 %v745, %v839
    %v872 = vmul.f32 %v748, %v840
    %v873 = vmul.f32 %v745, %v841
    %v874 = vmul.f32 %v748, %v842
    %v875 = vmul.f32 %v745, %v843
    %v876 = vmul.f32 %v748, %v844
    %v877 = vmul.f32 %v745, %v845
    %v878 = vmul.f32 %v748, %v846
    %v879 = vmul.f32 %v745, %v847
    %v880 = vmul.f32 %v748, %v848
    %v881 = vmul.f32 %v745, %v849
    %v882 = vmul.f32 %v748, %v850
    %v883 = vmul.f32 %v745, %v851
    %v884 = vmul.f32 %v748, %v852
    %v885 = vmul.f32 %v745, %v853
    %v886 = vmul.f32 %v748, %v854
    %v887 = vmul.f32 %v745, %v855
    %v888 = vmul.f32 %v748, %v856
    %v889 = vmul.f32 %v745, %v857
    %v890 = vmul.f32 %v748, %v858
    %v891 = vmul.f32 %v745, %v859
    %v892 = vmul.f32 %v748, %v860
    %v893 = vmul.f32 %v745, %v861
    %v894 = vmul.f32 %v748, %v862
    %v895 = vmul.f32 %v745, %v863
    %v896 = vmul.f32 %v748, %v864
    %v897 = vmul.f32 %v753, %v833
    %v898 = vmul.f32 %v756, %v834
    %v899 = vmul.f32 %v753, %v835
    %v900 = vmul.f32 %v756, %v836
    %v901 = vmul.f32 %v753, %v837
    %v902 = vmul.f32 %v756, %v838
    %v903 = vmul.f32 %v753, %v839
    %v904 = vmul.f32 %v756, %v840
    %v905 = vmul.f32 %v753, %v841
    %v906 = vmul.f32 %v756, %v842
    %v907 = vmul.f32 %v753, %v843
    %v908 = vmul.f32 %v756, %v844
    %v909 = vmul.f32 %v753, %v845
    %v910 = vmul.f32 %v756, %v846
    %v911 = vmul.f32 %v753, %v847
    %v912 = vmul.f32 %v756, %v848
    %v913 = vmul.f32 %v753, %v849
    %v914 = vmul.f32 %v756, %v850
    %v915 = vmul.f32 %v753, %v851
    %v916 = vmul.f32 %v756, %v852
    %v917 = vmul.f32 %v753, %v853
    %v918 = vmul.f32 %v756, %v854
    %v919 = vmul.f32 %v753, %v855
    %v920 = vmul.f32 %v756, %v856
    %v921 = vmul.f32 %v753, %v857
    %v922 = vmul.f32 %v756, %v858
    %v923 = vmul.f32 %v753, %v859
    %v924 = vmul.f32 %v756, %v860
    %v925 = vmul.f32 %v753, %v861
    %v926 = vmul.f32 %v756, %v862
    %v927 = vmul.f32 %v753, %v863
    %v928 = vmul.f32 %v756, %v864
    %v929 = vpack.c.bf16 %v866, %v865
    %v930 = vpack.c.bf16 %v868, %v867
    %v931 = vpack.c.bf16 %v870, %v869
    %v932 = vpack.c.bf16 %v872, %v871
    %v933 = vpack.c.bf16 %v874, %v873
    %v934 = vpack.c.bf16 %v876, %v875
    %v935 = vpack.c.bf16 %v878, %v877
    %v936 = vpack.c.bf16 %v880, %v879
    %v937 = vpack.c.bf16 %v882, %v881
    %v938 = vpack.c.bf16 %v884, %v883
    %v939 = vpack.c.bf16 %v886, %v885
    %v940 = vpack.c.bf16 %v888, %v887
    %v941 = vpack.c.bf16 %v890, %v889
    %v942 = vpack.c.bf16 %v892, %v891
    %v943 = vpack.c.bf16 %v894, %v893
    %v944 = vpack.c.bf16 %v896, %v895
    %v945 = vpack.c.bf16 %v898, %v897
    %v946 = vpack.c.bf16 %v900, %v899
    %v947 = vpack.c.bf16 %v902, %v901
    %v948 = vpack.c.bf16 %v904, %v903
    %v949 = vpack.c.bf16 %v906, %v905
    %v950 = vpack.c.bf16 %v908, %v907
    %v951 = vpack.c.bf16 %v910, %v909
    %v952 = vpack.c.bf16 %v912, %v911
    %v953 = vpack.c.bf16 %v914, %v913
    %v954 = vpack.c.bf16 %v916, %v915
    %v955 = vpack.c.bf16 %v918, %v917
    %v956 = vpack.c.bf16 %v920, %v919
    %v957 = vpack.c.bf16 %v922, %v921
    %v958 = vpack.c.bf16 %v924, %v923
    %v959 = vpack.c.bf16 %v926, %v925
    %v960 = vpack.c.bf16 %v928, %v927
    %v961 = vmul.f32 %v817, %v833
    %v962 = vmul.f32 %v820, %v834
    %v963 = vmul.f32 %v817, %v835
    %v964 = vmul.f32 %v820, %v836
    %v965 = vmul.f32 %v817, %v837
    %v966 = vmul.f32 %v820, %v838
    %v967 = vmul.f32 %v817, %v839
    %v968 = vmul.f32 %v820, %v840
    %v969 = vmul.f32 %v817, %v841
    %v970 = vmul.f32 %v820, %v842
    %v971 = vmul.f32 %v817, %v843
    %v972 = vmul.f32 %v820, %v844
    %v973 = vmul.f32 %v817, %v845
    %v974 = vmul.f32 %v820, %v846
    %v975 = vmul.f32 %v817, %v847
    %v976 = vmul.f32 %v820, %v848
    %v977 = vmul.f32 %v817, %v849
    %v978 = vmul.f32 %v820, %v850
    %v979 = vmul.f32 %v817, %v851
    %v980 = vmul.f32 %v820, %v852
    %v981 = vmul.f32 %v817, %v853
    %v982 = vmul.f32 %v820, %v854
    %v983 = vmul.f32 %v817, %v855
    %v984 = vmul.f32 %v820, %v856
    %v985 = vmul.f32 %v817, %v857
    %v986 = vmul.f32 %v820, %v858
    %v987 = vmul.f32 %v817, %v859
    %v988 = vmul.f32 %v820, %v860
    %v989 = vmul.f32 %v817, %v861
    %v990 = vmul.f32 %v820, %v862
    %v991 = vmul.f32 %v817, %v863
    %v992 = vmul.f32 %v820, %v864
    %v993 = vmul.f32 %v825, %v833
    %v994 = vmul.f32 %v828, %v834
    %v995 = vmul.f32 %v825, %v835
    %v996 = vmul.f32 %v828, %v836
    %v997 = vmul.f32 %v825, %v837
    %v998 = vmul.f32 %v828, %v838
    %v999 = vmul.f32 %v825, %v839
    %v1000 = vmul.f32 %v828, %v840
    %v1001 = vmul.f32 %v825, %v841
    %v1002 = vmul.f32 %v828, %v842
    %v1003 = vmul.f32 %v825, %v843
    %v1004 = vmul.f32 %v828, %v844
    %v1005 = vmul.f32 %v825, %v845
    %v1006 = vmul.f32 %v828, %v846
    %v1007 = vmul.f32 %v825, %v847
    %v1008 = vmul.f32 %v828, %v848
    %v1009 = vmul.f32 %v825, %v849
    %v1010 = vmul.f32 %v828, %v850
    %v1011 = vmul.f32 %v825, %v851
    %v1012 = vmul.f32 %v828, %v852
    %v1013 = vmul.f32 %v825, %v853
    %v1014 = vmul.f32 %v828, %v854
    %v1015 = vmul.f32 %v825, %v855
    %v1016 = vmul.f32 %v828, %v856
    %v1017 = vmul.f32 %v825, %v857
    %v1018 = vmul.f32 %v828, %v858
    %v1019 = vmul.f32 %v825, %v859
    %v1020 = vmul.f32 %v828, %v860
    %v1021 = vmul.f32 %v825, %v861
    %v1022 = vmul.f32 %v828, %v862
    %v1023 = vmul.f32 %v825, %v863
    %v1024 = vmul.f32 %v828, %v864
    %v1025 = vpack.c.bf16 %v962, %v961
    %v1026 = vpack.c.bf16 %v964, %v963
    %v1027 = vpack.c.bf16 %v966, %v965
    %v1028 = vpack.c.bf16 %v968, %v967
    %v1029 = vpack.c.bf16 %v970, %v969
    %v1030 = vpack.c.bf16 %v972, %v971
    %v1031 = vpack.c.bf16 %v974, %v973
    %v1032 = vpack.c.bf16 %v976, %v975
    %v1033 = vpack.c.bf16 %v978, %v977
    %v1034 = vpack.c.bf16 %v980, %v979
    %v1035 = vpack.c.bf16 %v982, %v981
    %v1036 = vpack.c.bf16 %v984, %v983
    %v1037 = vpack.c.bf16 %v986, %v985
    %v1038 = vpack.c.bf16 %v988, %v987
    %v1039 = vpack.c.bf16 %v990, %v989
    %v1040 = vpack.c.bf16 %v992, %v991
    %v1041 = vpack.c.bf16 %v994, %v993
    %v1042 = vpack.c.bf16 %v996, %v995
    %v1043 = vpack.c.bf16 %v998, %v997
    %v1044 = vpack.c.bf16 %v1000, %v999
    %v1045 = vpack.c.bf16 %v1002, %v1001
    %v1046 = vpack.c.bf16 %v1004, %v1003
    %v1047 = vpack.c.bf16 %v1006, %v1005
    %v1048 = vpack.c.bf16 %v1008, %v1007
    %v1049 = vpack.c.bf16 %v1010, %v1009
    %v1050 = vpack.c.bf16 %v1012, %v1011
    %v1051 = vpack.c.bf16 %v1014, %v1013
    %v1052 = vpack.c.bf16 %v1016, %v1015
    %v1053 = vpack.c.bf16 %v1018, %v1017
    %v1054 = vpack.c.bf16 %v1020, %v1019
    %v1055 = vpack.c.bf16 %v1022, %v1021
    %v1056 = vpack.c.bf16 %v1024, %v1023
    %v1058 = vsel %vm174, %v831, 0
    %v1061 = vsel %vm174, %v929, 0
    %v1064 = vsel %vm174, %v930, 0
    %v1067 = vsel %vm174, %v931, 0
    %v1070 = vsel %vm174, %v932, 0
    %v1073 = vsel %vm174, %v933, 0
    %v1076 = vsel %vm174, %v934, 0
    %v1079 = vsel %vm174, %v935, 0
    %v1082 = vsel %vm174, %v936, 0
    %v1085 = vsel %vm174, %v937, 0
    %v1088 = vsel %vm174, %v938, 0
    %v1091 = vsel %vm174, %v939, 0
    %v1094 = vsel %vm174, %v940, 0
    %v1097 = vsel %vm174, %v941, 0
    %v1100 = vsel %vm174, %v942, 0
    %v1103 = vsel %vm174, %v943, 0
    %v1106 = vsel %vm174, %v944, 0
    %1108 = vmatprep.subr.bf16.mxu0 0
    %1109 = vmatpush1.bf16.xpose.msra.mxu0 %v1061
    %1110 = vmatprep.subr.bf16.mxu0 0
    %1111 = vmatpush1.bf16.xpose.msra.mxu0 %v1064
    %1112 = vmatprep.subr.bf16.mxu0 0
    %1113 = vmatpush1.bf16.xpose.msra.mxu0 %v1067
    %1114 = vmatprep.subr.bf16.mxu0 0
    %1115 = vmatpush1.bf16.xpose.msra.mxu0 %v1070
    %1116 = vmatprep.subr.bf16.mxu0 0
    %1117 = vmatpush1.bf16.xpose.msra.mxu0 %v1073
    %1118 = vmatprep.subr.bf16.mxu0 0
    %1119 = vmatpush1.bf16.xpose.msra.mxu0 %v1076
    %1120 = vmatprep.subr.bf16.mxu0 0
    %1121 = vmatpush1.bf16.xpose.msra.mxu0 %v1079
    %1122 = vmatprep.subr.bf16.mxu0 0
    %1123 = vmatpush1.bf16.xpose.msra.mxu0 %v1082
    %1124 = vmatprep.subr.bf16.mxu0 0
    %1125 = vmatpush1.bf16.xpose.msra.mxu0 %v1085
    %1126 = vmatprep.subr.bf16.mxu0 0
    %1127 = vmatpush1.bf16.xpose.msra.mxu0 %v1088
    %1128 = vmatprep.subr.bf16.mxu0 0
    %1129 = vmatpush1.bf16.xpose.msra.mxu0 %v1091
    %1130 = vmatprep.subr.bf16.mxu0 0
    %1131 = vmatpush1.bf16.xpose.msra.mxu0 %v1094
    %1132 = vmatprep.subr.bf16.mxu0 0
    %1133 = vmatpush1.bf16.xpose.msra.mxu0 %v1097
    %1134 = vmatprep.subr.bf16.mxu0 0
    %1135 = vmatpush1.bf16.xpose.msra.mxu0 %v1100
    %1136 = vmatprep.subr.bf16.mxu0 0
    %1137 = vmatpush1.bf16.xpose.msra.mxu0 %v1103
    %1138 = vmatprep.subr.bf16.mxu0 0
    %1139 = vmatpush1.bf16.xpose.msra.mxu0 %v1106
    %1140 = vmatprep.mubr.bf16.mxu0 0
    %1141 = vmatmul.mubr.bf16.gmra.mrb[0].mxu0 %v1058
    %v1142 = vpop.f32.mrb[0].mxu0
    %v1143 = vadd.f32 0.0, %v1142
    %v1144 = vpop.f32.mrb[0].mxu0
    %v1145 = vadd.f32 0.0, %v1144
    %v1146 = vpop.f32.mrb[0].mxu0
    %v1147 = vadd.f32 0.0, %v1146
    %v1148 = vpop.f32.mrb[0].mxu0
    %v1149 = vadd.f32 0.0, %v1148
    %1150 = vdwg.mxu0
    %v1152 = vsel %vm174, %v832, 0
    %v1155 = vsel %vm174, %v945, 0
    %v1158 = vsel %vm174, %v946, 0
    %v1161 = vsel %vm174, %v947, 0
    %v1164 = vsel %vm174, %v948, 0
    %v1167 = vsel %vm174, %v949, 0
    %v1170 = vsel %vm174, %v950, 0
    %v1173 = vsel %vm174, %v951, 0
    %v1176 = vsel %vm174, %v952, 0
    %v1179 = vsel %vm174, %v953, 0
    %v1182 = vsel %vm174, %v954, 0
    %v1185 = vsel %vm174, %v955, 0
    %v1188 = vsel %vm174, %v956, 0
    %v1191 = vsel %vm174, %v957, 0
    %v1194 = vsel %vm174, %v958, 0
    %v1197 = vsel %vm174, %v959, 0
    %v1200 = vsel %vm174, %v960, 0
    %1202 = vmatprep.subr.bf16.mxu0 0
    %1203 = vmatpush1.bf16.xpose.msra.mxu0 %v1155
    %1204 = vmatprep.subr.bf16.mxu0 0
    %1205 = vmatpush1.bf16.xpose.msra.mxu0 %v1158
    %1206 = vmatprep.subr.bf16.mxu0 0
    %1207 = vmatpush1.bf16.xpose.msra.mxu0 %v1161
    %1208 = vmatprep.subr.bf16.mxu0 0
    %1209 = vmatpush1.bf16.xpose.msra.mxu0 %v1164
    %1210 = vmatprep.subr.bf16.mxu0 0
    %1211 = vmatpush1.bf16.xpose.msra.mxu0 %v1167
    %1212 = vmatprep.subr.bf16.mxu0 0
    %1213 = vmatpush1.bf16.xpose.msra.mxu0 %v1170
    %1214 = vmatprep.subr.bf16.mxu0 0
    %1215 = vmatpush1.bf16.xpose.msra.mxu0 %v1173
    %1216 = vmatprep.subr.bf16.mxu0 0
    %1217 = vmatpush1.bf16.xpose.msra.mxu0 %v1176
    %1218 = vmatprep.subr.bf16.mxu0 0
    %1219 = vmatpush1.bf16.xpose.msra.mxu0 %v1179
    %1220 = vmatprep.subr.bf16.mxu0 0
    %1221 = vmatpush1.bf16.xpose.msra.mxu0 %v1182
    %1222 = vmatprep.subr.bf16.mxu0 0
    %1223 = vmatpush1.bf16.xpose.msra.mxu0 %v1185
    %1224 = vmatprep.subr.bf16.mxu0 0
    %1225 = vmatpush1.bf16.xpose.msra.mxu0 %v1188
    %1226 = vmatprep.subr.bf16.mxu0 0
    %1227 = vmatpush1.bf16.xpose.msra.mxu0 %v1191
    %1228 = vmatprep.subr.bf16.mxu0 0
    %1229 = vmatpush1.bf16.xpose.msra.mxu0 %v1194
    %1230 = vmatprep.subr.bf16.mxu0 0
    %1231 = vmatpush1.bf16.xpose.msra.mxu0 %v1197
    %1232 = vmatprep.subr.bf16.mxu0 0
    %1233 = vmatpush1.bf16.xpose.msra.mxu0 %v1200
    %1234 = vmatprep.mubr.bf16.mxu0 0
    %1235 = vmatmul.mubr.bf16.gmra.mrb[0].mxu0 %v1152
    %v1236 = vpop.f32.mrb[0].mxu0
    %v1237 = vadd.f32 0.0, %v1236
    %v1238 = vpop.f32.mrb[0].mxu0
    %v1239 = vadd.f32 0.0, %v1238
    %v1240 = vpop.f32.mrb[0].mxu0
    %v1241 = vadd.f32 0.0, %v1240
    %v1242 = vpop.f32.mrb[0].mxu0
    %v1243 = vadd.f32 0.0, %v1242
    %1244 = vdwg.mxu0
    %v1245 = vmax.f32 %v1143, %v1145
    %1246 = vmax.xlane.f32.xlu0 %v1245
    %v1247 = vpop.xlane.xlu0 %1246
    %v1248 = vmax.f32 %v1147, %v1149
    %1249 = vmax.xlane.f32.xlu0 %v1248
    %v1250 = vpop.xlane.xlu0 %1249
    %v1251 = vmax.f32 %v1237, %v1239
    %1252 = vmax.xlane.f32.xlu0 %v1251
    %v1253 = vpop.xlane.xlu0 %1252
    %v1254 = vmax.f32 %v1241, %v1243
    %1255 = vmax.xlane.f32.xlu0 %v1254
    %v1256 = vpop.xlane.xlu0 %1255
    %v1257 = vsub.f32 %v1143, %v1247
    %v1258 = vsub.f32 %v1145, %v1247
    %v1259 = vsub.f32 %v1147, %v1250
    %v1260 = vsub.f32 %v1149, %v1250
    %v1261 = vsub.f32 %v1237, %v1253
    %v1262 = vsub.f32 %v1239, %v1253
    %v1263 = vsub.f32 %v1241, %v1256
    %v1264 = vsub.f32 %v1243, %v1256
    %v1265 = vmul.f32 %v1257, 1.442695
    %v1266 = vpow.pop %v1265
    %v1267 = vmul.f32 %v1258, 1.442695
    %v1268 = vpow.pop %v1267
    %v1269 = vmul.f32 %v1259, 1.442695
    %v1270 = vpow.pop %v1269
    %v1271 = vmul.f32 %v1260, 1.442695
    %v1272 = vpow.pop %v1271
    %v1273 = vmul.f32 %v1261, 1.442695
    %v1274 = vpow.pop %v1273
    %v1275 = vmul.f32 %v1262, 1.442695
    %v1276 = vpow.pop %v1275
    %v1277 = vmul.f32 %v1263, 1.442695
    %v1278 = vpow.pop %v1277
    %v1279 = vmul.f32 %v1264, 1.442695
    %v1280 = vpow.pop %v1279
    %v1281 = vpack.c.bf16 %v1270, %v1266
    %v1282 = vpack.c.bf16 %v1272, %v1268
    %v1283 = vpack.c.bf16 %v1278, %v1274
    %v1284 = vpack.c.bf16 %v1280, %v1276
    %v1285 = vld [vmem:[%s16] sm:$0xf]
    %v1286 = vld [vmem:[%s16 + $0x4] sm:$0xf]
    %v1287 = vld [vmem:[%s16 + $0x8] sm:$0xf]
    %v1288 = vld [vmem:[%s16 + $0xc] sm:$0xf]
    %v1289 = vld [vmem:[%s16 + $0x10] sm:$0xf]
    %v1290 = vld [vmem:[%s16 + $0x14] sm:$0xf]
    %v1291 = vld [vmem:[%s16 + $0x18] sm:$0xf]
    %v1292 = vld [vmem:[%s16 + $0x1c] sm:$0xf]
    %v1293 = vld [vmem:[%s16 + $0x20] sm:$0xf]
    %v1294 = vld [vmem:[%s16 + $0x24] sm:$0xf]
    %v1295 = vld [vmem:[%s16 + $0x28] sm:$0xf]
    %v1296 = vld [vmem:[%s16 + $0x2c] sm:$0xf]
    %v1297 = vld [vmem:[%s16 + $0x30] sm:$0xf]
    %v1298 = vld [vmem:[%s16 + $0x34] sm:$0xf]
    %v1299 = vld [vmem:[%s16 + $0x38] sm:$0xf]
    %v1300 = vld [vmem:[%s16 + $0x3c] sm:$0xf]
    %v1301 = vld [vmem:[%s16 + $0x40] sm:$0xf]
    %v1302 = vld [vmem:[%s16 + $0x44] sm:$0xf]
    %v1303 = vld [vmem:[%s16 + $0x48] sm:$0xf]
    %v1304 = vld [vmem:[%s16 + $0x4c] sm:$0xf]
    %v1305 = vld [vmem:[%s16 + $0x50] sm:$0xf]
    %v1306 = vld [vmem:[%s16 + $0x54] sm:$0xf]
    %v1307 = vld [vmem:[%s16 + $0x58] sm:$0xf]
    %v1308 = vld [vmem:[%s16 + $0x5c] sm:$0xf]
    %v1309 = vld [vmem:[%s16 + $0x60] sm:$0xf]
    %v1310 = vld [vmem:[%s16 + $0x64] sm:$0xf]
    %v1311 = vld [vmem:[%s16 + $0x68] sm:$0xf]
    %v1312 = vld [vmem:[%s16 + $0x6c] sm:$0xf]
    %v1313 = vld [vmem:[%s16 + $0x70] sm:$0xf]
    %v1314 = vld [vmem:[%s16 + $0x74] sm:$0xf]
    %v1315 = vld [vmem:[%s16 + $0x78] sm:$0xf]
    %v1316 = vld [vmem:[%s16 + $0x7c] sm:$0xf]
    %v1349 = vunpack.c.l.b16 %v1285
    %v1350 = vunpack.c.l.b16 %v1286
    %v1351 = vunpack.c.l.b16 %v1287
    %v1352 = vunpack.c.l.b16 %v1288
    %v1353 = vunpack.c.l.b16 %v1289
    %v1354 = vunpack.c.l.b16 %v1290
    %v1355 = vunpack.c.l.b16 %v1291
    %v1356 = vunpack.c.l.b16 %v1292
    %v1357 = vunpack.c.l.b16 %v1293
    %v1358 = vunpack.c.l.b16 %v1294
    %v1359 = vunpack.c.l.b16 %v1295
    %v1360 = vunpack.c.l.b16 %v1296
    %v1361 = vunpack.c.l.b16 %v1297
    %v1362 = vunpack.c.l.b16 %v1298
    %v1363 = vunpack.c.l.b16 %v1299
    %v1364 = vunpack.c.l.b16 %v1300
    %v1365 = vunpack.c.l.b16 %v1301
    %v1366 = vunpack.c.l.b16 %v1302
    %v1367 = vunpack.c.l.b16 %v1303
    %v1368 = vunpack.c.l.b16 %v1304
    %v1369 = vunpack.c.l.b16 %v1305
    %v1370 = vunpack.c.l.b16 %v1306
    %v1371 = vunpack.c.l.b16 %v1307
    %v1372 = vunpack.c.l.b16 %v1308
    %v1373 = vunpack.c.l.b16 %v1309
    %v1374 = vunpack.c.l.b16 %v1310
    %v1375 = vunpack.c.l.b16 %v1311
    %v1376 = vunpack.c.l.b16 %v1312
    %v1377 = vunpack.c.l.b16 %v1313
    %v1378 = vunpack.c.l.b16 %v1314
    %v1379 = vunpack.c.l.b16 %v1315
    %v1380 = vunpack.c.l.b16 %v1316
    %v1381 = vpack.c.b16 %v1350, %v1349
    %v1382 = vpack.c.b16 %v1352, %v1351
    %v1383 = vpack.c.b16 %v1354, %v1353
    %v1384 = vpack.c.b16 %v1356, %v1355
    %v1385 = vpack.c.b16 %v1358, %v1357
    %v1386 = vpack.c.b16 %v1360, %v1359
    %v1387 = vpack.c.b16 %v1362, %v1361
    %v1388 = vpack.c.b16 %v1364, %v1363
    %v1389 = vpack.c.b16 %v1366, %v1365
    %v1390 = vpack.c.b16 %v1368, %v1367
    %v1391 = vpack.c.b16 %v1370, %v1369
    %v1392 = vpack.c.b16 %v1372, %v1371
    %v1393 = vpack.c.b16 %v1374, %v1373
    %v1394 = vpack.c.b16 %v1376, %v1375
    %v1395 = vpack.c.b16 %v1378, %v1377
    %v1396 = vpack.c.b16 %v1380, %v1379
    %1413 = vmatprep.subr.bf16.mxu0 0
    %1414 = vmatpush1.bf16.msra.mxu0 %v1381
    %1415 = vmatprep.subr.bf16.mxu0 0
    %1416 = vmatpush1.bf16.msra.mxu0 %v1382
    %1417 = vmatprep.subr.bf16.mxu0 0
    %1418 = vmatpush1.bf16.msra.mxu0 %v1383
    %1419 = vmatprep.subr.bf16.mxu0 0
    %1420 = vmatpush1.bf16.msra.mxu0 %v1384
    %1421 = vmatprep.subr.bf16.mxu0 0
    %1422 = vmatpush1.bf16.msra.mxu0 %v1385
    %1423 = vmatprep.subr.bf16.mxu0 0
    %1424 = vmatpush1.bf16.msra.mxu0 %v1386
    %1425 = vmatprep.subr.bf16.mxu0 0
    %1426 = vmatpush1.bf16.msra.mxu0 %v1387
    %1427 = vmatprep.subr.bf16.mxu0 0
    %1428 = vmatpush1.bf16.msra.mxu0 %v1388
    %1429 = vmatprep.subr.bf16.mxu0 0
    %1430 = vmatpush1.bf16.msra.mxu0 %v1389
    %1431 = vmatprep.subr.bf16.mxu0 0
    %1432 = vmatpush1.bf16.msra.mxu0 %v1390
    %1433 = vmatprep.subr.bf16.mxu0 0
    %1434 = vmatpush1.bf16.msra.mxu0 %v1391
    %1435 = vmatprep.subr.bf16.mxu0 0
    %1436 = vmatpush1.bf16.msra.mxu0 %v1392
    %1437 = vmatprep.subr.bf16.mxu0 0
    %1438 = vmatpush1.bf16.msra.mxu0 %v1393
    %1439 = vmatprep.subr.bf16.mxu0 0
    %1440 = vmatpush1.bf16.msra.mxu0 %v1394
    %1441 = vmatprep.subr.bf16.mxu0 0
    %1442 = vmatpush1.bf16.msra.mxu0 %v1395
    %1443 = vmatprep.subr.bf16.mxu0 0
    %1444 = vmatpush1.bf16.msra.mxu0 %v1396
    %1445 = vmatprep.mubr.bf16.mxu0 %v1282
    %1446 = vmatmul.mubr.bf16.gmra.mrb[0].mxu0 %v1281
    %v1447 = vpop.f32.mrb[0].mxu0
    %v1448 = vadd.f32 1e-20, %v1447
    %v1449 = vpop.f32.mrb[0].mxu0
    %v1450 = vpop.f32.mrb[0].mxu0
    %v1451 = vadd.f32 1e-20, %v1450
    %v1452 = vpop.f32.mrb[0].mxu0
    %1453 = vmatprep.mubr.bf16.mxu0 %v1284
    %1454 = vmatmul.mubr.bf16.gmra.mrb[0].mxu0 %v1283
    %v1455 = vpop.f32.mrb[0].mxu0
    %v1456 = vadd.f32 1e-20, %v1455
    %v1457 = vpop.f32.mrb[0].mxu0
    %v1458 = vpop.f32.mrb[0].mxu0
    %v1459 = vadd.f32 1e-20, %v1458
    %v1460 = vpop.f32.mrb[0].mxu0
    %1461 = vdwg.mxu0
    %v1462 = vrcp.pop %v1448
    %v1463 = vrcp.pop %v1451
    %v1464 = vrcp.pop %v1456
    %v1465 = vrcp.pop %v1459
    %v1466 = vpack.c.bf16 %v1463, %v1462
    %v1467 = vpack.c.bf16 %v1465, %v1464
    %v1468 = vld [vmem:[%s17] sm:$0xf]
    %v1469 = vld [vmem:[%s17 + $0x4] sm:$0xf]
    %v1472 = vunpack.c.l.b16 %v1468
    %v1473 = vunpack.c.l.b16 %v1469
    %v1474 = vpack.c.b16 %v1473, %v1472
    %vm1476 = vcmask 130048
    %v1478 = vsel %vm1476, %v1466, 0
    %v1481 = vsel %vm1476, %v1467, 0
    %1483 = vmatprep.subr.bf16.mxu0 0
    %1484 = vmatpush1.bf16.msra.mxu0 %v1474
    %1485 = vmatprep.subr.bf16.mxu0 0
    %1486 = vmatpush1.bf16.msra.mxu0 0
    %1487 = vmatprep.subr.bf16.mxu0 0
    %1488 = vmatpush1.bf16.msra.mxu0 0
    %1489 = vmatprep.subr.bf16.mxu0 0
    %1490 = vmatpush1.bf16.msra.mxu0 0
    %1491 = vmatprep.subr.bf16.mxu0 0
    %1492 = vmatpush1.bf16.msra.mxu0 0
    %1493 = vmatprep.subr.bf16.mxu0 0
    %1494 = vmatpush1.bf16.msra.mxu0 0
    %1495 = vmatprep.subr.bf16.mxu0 0
    %1496 = vmatpush1.bf16.msra.mxu0 0
    %1497 = vmatprep.subr.bf16.mxu0 0
    %1498 = vmatpush1.bf16.msra.mxu0 0
    %1499 = vmatprep.subr.bf16.mxu0 0
    %1500 = vmatpush1.bf16.msra.mxu0 0
    %1501 = vmatprep.subr.bf16.mxu0 0
    %1502 = vmatpush1.bf16.msra.mxu0 0
    %1503 = vmatprep.subr.bf16.mxu0 0
    %1504 = vmatpush1.bf16.msra.mxu0 0
    %1505 = vmatprep.subr.bf16.mxu0 0
    %1506 = vmatpush1.bf16.msra.mxu0 0
    %1507 = vmatprep.subr.bf16.mxu0 0
    %1508 = vmatpush1.bf16.msra.mxu0 0
    %1509 = vmatprep.subr.bf16.mxu0 0
    %1510 = vmatpush1.bf16.msra.mxu0 0
    %1511 = vmatprep.subr.bf16.mxu0 0
    %1512 = vmatpush1.bf16.msra.mxu0 0
    %1513 = vmatprep.subr.bf16.mxu0 0
    %1514 = vmatpush1.bf16.msra.mxu0 0
    %1515 = vmatprep.mubr.bf16.mxu0 0
    %1516 = vmatmul.mubr.bf16.gmra.mrb[0].mxu0 %v1478
    %v1517 = vpop.f32.mrb[0].mxu0
    %v1518 = vadd.f32 0.0, %v1517
    %v1519 = vpop.f32.mrb[0].mxu0
    %v1520 = vpop.f32.mrb[0].mxu0
    %v1521 = vadd.f32 0.0, %v1520
    %v1522 = vpop.f32.mrb[0].mxu0
    %1523 = vmatprep.mubr.bf16.mxu0 0
    %1524 = vmatmul.mubr.bf16.gmra.mrb[0].mxu0 %v1481
    %v1525 = vpop.f32.mrb[0].mxu0
    %v1526 = vadd.f32 0.0, %v1525
    %v1527 = vpop.f32.mrb[0].mxu0
    %v1528 = vpop.f32.mrb[0].mxu0
    %v1529 = vadd.f32 0.0, %v1528
    %v1530 = vpop.f32.mrb[0].mxu0
    %1531 = vdwg.mxu0
    %1532 = vmatprep.subr.bf16.mxu0 0
    %1533 = vmatpush1.bf16.msra.mxu0 %v1025
    %1534 = vmatprep.subr.bf16.mxu0 0
    %1535 = vmatpush1.bf16.msra.mxu0 %v1026
    %1536 = vmatprep.subr.bf16.mxu0 0
    %1537 = vmatpush1.bf16.msra.mxu0 %v1027
    %1538 = vmatprep.subr.bf16.mxu0 0
    %1539 = vmatpush1.bf16.msra.mxu0 %v1028
    %1540 = vmatprep.subr.bf16.mxu0 0
    %1541 = vmatpush1.bf16.msra.mxu0 %v1029
    %1542 = vmatprep.subr.bf16.mxu0 0
    %1543 = vmatpush1.bf16.msra.mxu0 %v1030
    %1544 = vmatprep.subr.bf16.mxu0 0
    %1545 = vmatpush1.bf16.msra.mxu0 %v1031
    %1546 = vmatprep.subr.bf16.mxu0 0
    %1547 = vmatpush1.bf16.msra.mxu0 %v1032
    %1548 = vmatprep.subr.bf16.mxu0 0
    %1549 = vmatpush1.bf16.msra.mxu0 %v1033
    %1550 = vmatprep.subr.bf16.mxu0 0
    %1551 = vmatpush1.bf16.msra.mxu0 %v1034
    %1552 = vmatprep.subr.bf16.mxu0 0
    %1553 = vmatpush1.bf16.msra.mxu0 %v1035
    %1554 = vmatprep.subr.bf16.mxu0 0
    %1555 = vmatpush1.bf16.msra.mxu0 %v1036
    %1556 = vmatprep.subr.bf16.mxu0 0
    %1557 = vmatpush1.bf16.msra.mxu0 %v1037
    %1558 = vmatprep.subr.bf16.mxu0 0
    %1559 = vmatpush1.bf16.msra.mxu0 %v1038
    %1560 = vmatprep.subr.bf16.mxu0 0
    %1561 = vmatpush1.bf16.msra.mxu0 %v1039
    %1562 = vmatprep.subr.bf16.mxu0 0
    %1563 = vmatpush1.bf16.msra.mxu0 %v1040
    %1564 = vmatprep.mubr.bf16.mxu0 %v1282
    %1565 = vmatmul.mubr.bf16.gmra.mrb[0].mxu0 %v1281
    %v1566 = vpop.f32.mrb[0].mxu0
    %v1567 = vadd.f32 0.0, %v1566
    %v1568 = vpop.f32.mrb[0].mxu0
    %v1569 = vpop.f32.mrb[0].mxu0
    %v1570 = vadd.f32 0.0, %v1569
    %v1571 = vpop.f32.mrb[0].mxu0
    %1572 = vdwg.mxu0
    %1573 = vmatprep.subr.bf16.mxu0 0
    %1574 = vmatpush1.bf16.msra.mxu0 %v1041
    %1575 = vmatprep.subr.bf16.mxu0 0
    %1576 = vmatpush1.bf16.msra.mxu0 %v1042
    %1577 = vmatprep.subr.bf16.mxu0 0
    %1578 = vmatpush1.bf16.msra.mxu0 %v1043
    %1579 = vmatprep.subr.bf16.mxu0 0
    %1580 = vmatpush1.bf16.msra.mxu0 %v1044
    %1581 = vmatprep.subr.bf16.mxu0 0
    %1582 = vmatpush1.bf16.msra.mxu0 %v1045
    %1583 = vmatprep.subr.bf16.mxu0 0
    %1584 = vmatpush1.bf16.msra.mxu0 %v1046
    %1585 = vmatprep.subr.bf16.mxu0 0
    %1586 = vmatpush1.bf16.msra.mxu0 %v1047
    %1587 = vmatprep.subr.bf16.mxu0 0
    %1588 = vmatpush1.bf16.msra.mxu0 %v1048
    %1589 = vmatprep.subr.bf16.mxu0 0
    %1590 = vmatpush1.bf16.msra.mxu0 %v1049
    %1591 = vmatprep.subr.bf16.mxu0 0
    %1592 = vmatpush1.bf16.msra.mxu0 %v1050
    %1593 = vmatprep.subr.bf16.mxu0 0
    %1594 = vmatpush1.bf16.msra.mxu0 %v1051
    %1595 = vmatprep.subr.bf16.mxu0 0
    %1596 = vmatpush1.bf16.msra.mxu0 %v1052
    %1597 = vmatprep.subr.bf16.mxu0 0
    %1598 = vmatpush1.bf16.msra.mxu0 %v1053
    %1599 = vmatprep.subr.bf16.mxu0 0
    %1600 = vmatpush1.bf16.msra.mxu0 %v1054
    %1601 = vmatprep.subr.bf16.mxu0 0
    %1602 = vmatpush1.bf16.msra.mxu0 %v1055
    %1603 = vmatprep.subr.bf16.mxu0 0
    %1604 = vmatpush1.bf16.msra.mxu0 %v1056
    %1605 = vmatprep.mubr.bf16.mxu0 %v1284
    %1606 = vmatmul.mubr.bf16.gmra.mrb[0].mxu0 %v1283
    %v1607 = vpop.f32.mrb[0].mxu0
    %v1608 = vadd.f32 0.0, %v1607
    %v1609 = vpop.f32.mrb[0].mxu0
    %v1610 = vpop.f32.mrb[0].mxu0
    %v1611 = vadd.f32 0.0, %v1610
    %v1612 = vpop.f32.mrb[0].mxu0
    %1613 = vdwg.mxu0
    %v1614 = vmul.f32 %v1567, %v1518
    %v1615 = vmul.f32 %v1570, %v1521
    %v1616 = vmul.f32 %v1608, %v1526
    %v1617 = vmul.f32 %v1611, %v1529
    %v1618 = vpack.c.bf16 %v1615, %v1614
    %v1619 = vpack.c.bf16 %v1617, %v1616
    %v1620 = vld [vmem:[%s9] sm:$0xf]
    %v1621 = vld [vmem:[%s9 + $0x4] sm:$0xf]
    %v1622 = vld [vmem:[%s9 + $0x8] sm:$0xf]
    %v1623 = vld [vmem:[%s9 + $0xc] sm:$0xf]
    %v1624 = vld [vmem:[%s10] sm:$0x1]
    %v1626 = vlaneseq
    %v1627 = vshrl.u32 %v1626, 7
    %v1628 = vsub.s32 0, %v1627
    %v1629 = vrot.slane %v1624, %v1628
    %v1635 = vunpack.c.l.b16 %v1620
    %v1636 = vunpack.c.l.b16 %v1621
    %v1637 = vunpack.c.l.b16 %v1622
    %v1638 = vunpack.c.l.b16 %v1623
    %v1639 = vpack.c.b16 %v1636, %v1635
    %v1640 = vpack.c.b16 %v1638, %v1637
    %v1644 = vsel %vm174, %v1618, 0
    %v1647 = vsel %vm174, %v1619, 0
    %1649 = vmatprep.subr.bf16.mxu0 0
    %1650 = vmatpush1.bf16.msra.mxu0 %v1639
    %1651 = vmatprep.subr.bf16.mxu0 0
    %1652 = vmatpush1.bf16.msra.mxu0 %v1640
    %1653 = vmatprep.subr.bf16.mxu0 0
    %1654 = vmatpush1.bf16.msra.mxu0 0
    %1655 = vmatprep.subr.bf16.mxu0 0
    %1656 = vmatpush1.bf16.msra.mxu0 0
    %1657 = vmatprep.subr.bf16.mxu0 0
    %1658 = vmatpush1.bf16.msra.mxu0 0
    %1659 = vmatprep.subr.bf16.mxu0 0
    %1660 = vmatpush1.bf16.msra.mxu0 0
    %1661 = vmatprep.subr.bf16.mxu0 0
    %1662 = vmatpush1.bf16.msra.mxu0 0
    %1663 = vmatprep.subr.bf16.mxu0 0
    %1664 = vmatpush1.bf16.msra.mxu0 0
    %1665 = vmatprep.subr.bf16.mxu0 0
    %1666 = vmatpush1.bf16.msra.mxu0 0
    %1667 = vmatprep.subr.bf16.mxu0 0
    %1668 = vmatpush1.bf16.msra.mxu0 0
    %1669 = vmatprep.subr.bf16.mxu0 0
    %1670 = vmatpush1.bf16.msra.mxu0 0
    %1671 = vmatprep.subr.bf16.mxu0 0
    %1672 = vmatpush1.bf16.msra.mxu0 0
    %1673 = vmatprep.subr.bf16.mxu0 0
    %1674 = vmatpush1.bf16.msra.mxu0 0
    %1675 = vmatprep.subr.bf16.mxu0 0
    %1676 = vmatpush1.bf16.msra.mxu0 0
    %1677 = vmatprep.subr.bf16.mxu0 0
    %1678 = vmatpush1.bf16.msra.mxu0 0
    %1679 = vmatprep.subr.bf16.mxu0 0
    %1680 = vmatpush1.bf16.msra.mxu0 0
    %1681 = vmatprep.mubr.bf16.mxu0 0
    %1682 = vmatmul.mubr.bf16.gmra.mrb[0].mxu0 %v1644
    %v1683 = vpop.f32.mrb[0].mxu0
    %v1684 = vadd.f32 %v1629, %v1683
    %v1685 = vpop.f32.mrb[0].mxu0
    %v1686 = vpop.f32.mrb[0].mxu0
    %v1687 = vadd.f32 %v1629, %v1686
    %v1688 = vpop.f32.mrb[0].mxu0
    %1689 = vmatprep.mubr.bf16.mxu0 0
    %1690 = vmatmul.mubr.bf16.gmra.mrb[0].mxu0 %v1647
    %v1691 = vpop.f32.mrb[0].mxu0
    %v1692 = vadd.f32 %v1629, %v1691
    %v1693 = vpop.f32.mrb[0].mxu0
    %v1694 = vpop.f32.mrb[0].mxu0
    %v1695 = vadd.f32 %v1629, %v1694
    %v1696 = vpop.f32.mrb[0].mxu0
    %1697 = vdwg.mxu0
    %v1698 = vpack.c.bf16 %v1687, %v1684
    %v1699 = vpack.c.bf16 %v1695, %v1692
    %v1700 = vld [vmem:[%s11] sm:$0xf]
    %v1701 = vld [vmem:[%s11 + $0x4] sm:$0xf]
    %v1702 = vld [vmem:[%s11 + $0x8] sm:$0xf]
    %v1703 = vld [vmem:[%s11 + $0xc] sm:$0xf]
    %v1704 = vld [vmem:[%s12] sm:$0x1]
    %v1706 = vlaneseq
    %v1707 = vshrl.u32 %v1706, 7
    %v1708 = vsub.s32 0, %v1707
    %v1709 = vrot.slane %v1704, %v1708
    %v1715 = vunpack.c.l.b16 %v1700
    %v1716 = vunpack.c.l.b16 %v1701
    %v1717 = vunpack.c.l.b16 %v1702
    %v1718 = vunpack.c.l.b16 %v1703
    %v1719 = vpack.c.b16 %v1716, %v1715
    %v1720 = vpack.c.b16 %v1718, %v1717
    %v1724 = vsel %vm174, %v1698, 0
    %v1727 = vsel %vm174, %v1699, 0
    %1729 = vmatprep.subr.bf16.mxu0 0
    %1730 = vmatpush1.bf16.msra.mxu0 %v1719
    %1731 = vmatprep.subr.bf16.mxu0 0
    %1732 = vmatpush1.bf16.msra.mxu0 %v1720
    %1733 = vmatprep.subr.bf16.mxu0 0
    %1734 = vmatpush1.bf16.msra.mxu0 0
    %1735 = vmatprep.subr.bf16.mxu0 0
    %1736 = vmatpush1.bf16.msra.mxu0 0
    %1737 = vmatprep.subr.bf16.mxu0 0
    %1738 = vmatpush1.bf16.msra.mxu0 0
    %1739 = vmatprep.subr.bf16.mxu0 0
    %1740 = vmatpush1.bf16.msra.mxu0 0
    %1741 = vmatprep.subr.bf16.mxu0 0
    %1742 = vmatpush1.bf16.msra.mxu0 0
    %1743 = vmatprep.subr.bf16.mxu0 0
    %1744 = vmatpush1.bf16.msra.mxu0 0
    %1745 = vmatprep.subr.bf16.mxu0 0
    %1746 = vmatpush1.bf16.msra.mxu0 0
    %1747 = vmatprep.subr.bf16.mxu0 0
    %1748 = vmatpush1.bf16.msra.mxu0 0
    %1749 = vmatprep.subr.bf16.mxu0 0
    %1750 = vmatpush1.bf16.msra.mxu0 0
    %1751 = vmatprep.subr.bf16.mxu0 0
    %1752 = vmatpush1.bf16.msra.mxu0 0
    %1753 = vmatprep.subr.bf16.mxu0 0
    %1754 = vmatpush1.bf16.msra.mxu0 0
    %1755 = vmatprep.subr.bf16.mxu0 0
    %1756 = vmatpush1.bf16.msra.mxu0 0
    %1757 = vmatprep.subr.bf16.mxu0 0
    %1758 = vmatpush1.bf16.msra.mxu0 0
    %1759 = vmatprep.subr.bf16.mxu0 0
    %1760 = vmatpush1.bf16.msra.mxu0 0
    %1761 = vmatprep.mubr.bf16.mxu0 0
    %1762 = vmatmul.mubr.bf16.gmra.mrb[0].mxu0 %v1724
    %v1763 = vpop.f32.mrb[0].mxu0
    %v1764 = vadd.f32 %v1709, %v1763
    %v1765 = vpop.f32.mrb[0].mxu0
    %v1766 = vpop.f32.mrb[0].mxu0
    %v1767 = vadd.f32 %v1709, %v1766
    %v1768 = vpop.f32.mrb[0].mxu0
    %1769 = vmatprep.mubr.bf16.mxu0 0
    %1770 = vmatmul.mubr.bf16.gmra.mrb[0].mxu0 %v1727
    %v1771 = vpop.f32.mrb[0].mxu0
    %v1772 = vadd.f32 %v1709, %v1771
    %v1773 = vpop.f32.mrb[0].mxu0
    %v1774 = vpop.f32.mrb[0].mxu0
    %v1775 = vadd.f32 %v1709, %v1774
    %v1776 = vpop.f32.mrb[0].mxu0
    %1777 = vdwg.mxu0
    %v1778 = vmax.f32 %v1764, 0.0
    %v1779 = vmax.f32 %v1767, 0.0
    %v1780 = vmax.f32 %v1772, 0.0
    %v1781 = vmax.f32 %v1775, 0.0
    %v1782 = vpack.c.bf16 %v1779, %v1778
    %v1783 = vpack.c.bf16 %v1781, %v1780
    %v1784 = vld [vmem:[%s13] sm:$0xf]
    %v1785 = vld [vmem:[%s13 + $0x4] sm:$0xf]
    %v1786 = vld [vmem:[%s13 + $0x8] sm:$0xf]
    %v1787 = vld [vmem:[%s13 + $0xc] sm:$0xf]
    %v1788 = vld [vmem:[%s13 + $0x10] sm:$0xf]
    %v1789 = vld [vmem:[%s13 + $0x14] sm:$0xf]
    %v1790 = vld [vmem:[%s13 + $0x18] sm:$0xf]
    %v1791 = vld [vmem:[%s13 + $0x1c] sm:$0xf]
    %v1792 = vld [vmem:[%s14] sm:$0x1]
    %v1794 = vlaneseq
    %v1795 = vshrl.u32 %v1794, 7
    %v1796 = vsub.s32 0, %v1795
    %v1797 = vrot.slane %v1792, %v1796
    %v1807 = vunpack.c.l.b16 %v1784
    %v1808 = vunpack.c.l.b16 %v1785
    %v1809 = vunpack.c.l.b16 %v1786
    %v1810 = vunpack.c.l.b16 %v1787
    %v1811 = vunpack.c.l.b16 %v1788
    %v1812 = vunpack.c.l.b16 %v1789
    %v1813 = vunpack.c.l.b16 %v1790
    %v1814 = vunpack.c.l.b16 %v1791
    %v1815 = vpack.c.b16 %v1808, %v1807
    %v1816 = vpack.c.b16 %v1810, %v1809
    %v1817 = vpack.c.b16 %v1812, %v1811
    %v1818 = vpack.c.b16 %v1814, %v1813
    %v1824 = vsel %vm179, %v1782, 0
    %v1827 = vsel %vm179, %v1783, 0
    %1829 = vmatprep.subr.bf16.mxu0 0
    %1830 = vmatpush1.bf16.msra.mxu0 %v1815
    %1831 = vmatprep.subr.bf16.mxu0 0
    %1832 = vmatpush1.bf16.msra.mxu0 %v1816
    %1833 = vmatprep.subr.bf16.mxu0 0
    %1834 = vmatpush1.bf16.msra.mxu0 %v1817
    %1835 = vmatprep.subr.bf16.mxu0 0
    %1836 = vmatpush1.bf16.msra.mxu0 %v1818
    %1837 = vmatprep.subr.bf16.mxu0 0
    %1838 = vmatpush1.bf16.msra.mxu0 0
    %1839 = vmatprep.subr.bf16.mxu0 0
    %1840 = vmatpush1.bf16.msra.mxu0 0
    %1841 = vmatprep.subr.bf16.mxu0 0
    %1842 = vmatpush1.bf16.msra.mxu0 0
    %1843 = vmatprep.subr.bf16.mxu0 0
    %1844 = vmatpush1.bf16.msra.mxu0 0
    %1845 = vmatprep.subr.bf16.mxu0 0
    %1846 = vmatpush1.bf16.msra.mxu0 0
    %1847 = vmatprep.subr.bf16.mxu0 0
    %1848 = vmatpush1.bf16.msra.mxu0 0
    %1849 = vmatprep.subr.bf16.mxu0 0
    %1850 = vmatpush1.bf16.msra.mxu0 0
    %1851 = vmatprep.subr.bf16.mxu0 0
    %1852 = vmatpush1.bf16.msra.mxu0 0
    %1853 = vmatprep.subr.bf16.mxu0 0
    %1854 = vmatpush1.bf16.msra.mxu0 0
    %1855 = vmatprep.subr.bf16.mxu0 0
    %1856 = vmatpush1.bf16.msra.mxu0 0
    %1857 = vmatprep.subr.bf16.mxu0 0
    %1858 = vmatpush1.bf16.msra.mxu0 0
    %1859 = vmatprep.subr.bf16.mxu0 0
    %1860 = vmatpush1.bf16.msra.mxu0 0
    %1861 = vmatprep.mubr.bf16.mxu0 0
    %1862 = vmatmul.mubr.bf16.gmra.mrb[0].mxu0 %v1824
    %v1863 = vpop.f32.mrb[0].mxu0
    %v1864 = vadd.f32 %v1797, %v1863
    %v1865 = vpop.f32.mrb[0].mxu0
    %v1866 = vpop.f32.mrb[0].mxu0
    %v1867 = vadd.f32 %v1797, %v1866
    %v1868 = vpop.f32.mrb[0].mxu0
    %1869 = vmatprep.mubr.bf16.mxu0 0
    %1870 = vmatmul.mubr.bf16.gmra.mrb[0].mxu0 %v1827
    %v1871 = vpop.f32.mrb[0].mxu0
    %v1872 = vadd.f32 %v1797, %v1871
    %v1873 = vpop.f32.mrb[0].mxu0
    %v1874 = vpop.f32.mrb[0].mxu0
    %v1875 = vadd.f32 %v1797, %v1874
    %v1876 = vpop.f32.mrb[0].mxu0
    %1877 = vdwg.mxu0
    %1878 = vxpose.xlu0.b32.start [1/16] %v1864, 128
    %1879 = vxpose.xlu0.b32.cont [2/16] %v1867, 128
    %1880 = vxpose.xlu0.b32.cont [3/16] %v1872, 128
    %1881 = vxpose.xlu0.b32.cont [4/16] %v1875, 128
    %1882 = vxpose.xlu0.b32.cont [5/16] 0.0, 128
    %1883 = vxpose.xlu0.b32.cont [6/16] 0.0, 128
    %1884 = vxpose.xlu0.b32.cont [7/16] 0.0, 128
    %1885 = vxpose.xlu0.b32.cont [8/16] 0.0, 128
    %1886 = vxpose.xlu0.b32.cont [9/16] 0.0, 128
    %1887 = vxpose.xlu0.b32.cont [10/16] 0.0, 128
    %1888 = vxpose.xlu0.b32.cont [11/16] 0.0, 128
    %1889 = vxpose.xlu0.b32.cont [12/16] 0.0, 128
    %1890 = vxpose.xlu0.b32.cont [13/16] 0.0, 128
    %1891 = vxpose.xlu0.b32.cont [14/16] 0.0, 128
    %1892 = vxpose.xlu0.b32.cont [15/16] 0.0, 128
    %1893 = vxpose.xlu0.b32.end [16/16] 0.0, 128
    %v1894 = vpop.trf.xlu0
    %v1895 = vpop.trf.xlu0
    %v1896 = vpop.trf.xlu0
    %v1897 = vpop.trf.xlu0
    %v1898 = vpop.trf.xlu0
    %v1899 = vpop.trf.xlu0
    %v1900 = vpop.trf.xlu0
    %v1901 = vpop.trf.xlu0
    %v1902 = vpop.trf.xlu0
    %v1903 = vpop.trf.xlu0
    %v1904 = vpop.trf.xlu0
    %v1905 = vpop.trf.xlu0
    %v1906 = vpop.trf.xlu0
    %v1907 = vpop.trf.xlu0
    %v1908 = vpop.trf.xlu0
    %v1909 = vpop.trf.xlu0
    %1910 = vst.msk [vmem:[#allocation2] sm:$0xff] %vm174, %v1894
    %1911 = vst.msk [vmem:[#allocation2 + $0x8] sm:$0xff] %vm174, %v1895
    %1912 = vst.msk [vmem:[#allocation2 + $0x10] sm:$0xff] %vm174, %v1896
    %1913 = vst.msk [vmem:[#allocation2 + $0x18] sm:$0xff] %vm174, %v1897
    // Predicated region
    $region74: #{tpu_custom_call.1} parent=1 // pred_check
      _
    $region75: #{tpu_custom_call.1} parent=1 // pred_check_branch
      %1915 = sbr.rel (0) target = $region77
    $region76: #{tpu_custom_call.1} parent=1 // pred_region
      %s1917 = ssub.s32 512, 512
      %1918 = vsyncadd [#allocation3], %s1917
      %s1919 = sshll.u32 [#allocation2], 4
      %s1920 = int_to_ptr.vmem [resolvable:$true] %s1919
      %1925 = dma.vmem_to_hbm [thread:$0]  %s1920, 512, %s18, [#allocation3], 128, 128, 8
    $region77: #{tpu_custom_call.1} parent=1 // pred_fallthru
      _
    // Predicated region
    $region78: #{tpu_custom_call.1} parent=1 // pred_check
      _
    $region79: #{tpu_custom_call.1} parent=1 // pred_check_branch
      %1927 = sbr.rel (0) target = $region81
    $region80: #{tpu_custom_call.1} parent=1 // pred_region
      %1928 = dma.done [#allocation3], 512
    $region81: #{tpu_custom_call.1} parent=1 // pred_fallthru
      _
    %1929 = vsyncpa [#allocation3], 1

</llo_original>
